<compile_context>
chip_gen: v7x
topology: tpu7x:2x2x1
jax: 0.10.0
libtpu: 0.0.40
codegen_flags: <defaults>
</compile_context>

<pallas_src>
import math

import jax
import jax.numpy as jnp
from jax.experimental import pallas as pl
from jax.experimental.pallas import tpu as pltpu

# Small, module-consistent sizes.
D_MODEL = 32
NHEAD = 4
HEAD_DIM = D_MODEL // NHEAD
DFF = 64          # dim_feedforward
SEQ = 8
BATCH = 2
EPS = 1e-5        # nn.LayerNorm default
NEG_BIG = -1e30

# ---- packed parameter slab layout (f32, shape (SLAB_ROWS, 128)) -------------
OFF_WQ = 0                       # rows   0: 32, cols 0:32   wq.T * 1/sqrt(hd)
OFF_WK = 32                      # rows  32: 64, cols 0:32   wk.T
OFF_WV = 64                      # rows  64: 96, cols 0:32   wv.T
OFF_WO = 96                      # rows  96:128, cols 0:32   wo.T
OFF_W1 = 128                     # rows 128:160, cols 0:64   w1.T  (D, DFF)
OFF_W2 = 160                     # rows 160:224, cols 0:32   w2.T  (DFF, D)
OFF_VEC = 224                    # rows 224:240, cols 0:128  biases / LN / head masks
OFF_MASK = 240                   # rows 240:256, cols 0:16   additive batch mask (R,R)
SLAB_ROWS = 256
SLAB_COLS = 128

# Rows inside the VEC block.
(ROW_BQ, ROW_BK, ROW_BV, ROW_BO, ROW_B2, ROW_G1, ROW_BE1,
 ROW_G2, ROW_BE2, ROW_B1, ROW_HM0) = range(11)       # ROW_HM0..+3 = head lane masks


def _layer_norm(x, gamma, beta):
    mean = jnp.mean(x, axis=-1, keepdims=True)
    var = jnp.mean((x - mean) ** 2, axis=-1, keepdims=True)
    return (x - mean) * jax.lax.rsqrt(var + EPS) * gamma + beta


def encoder_layer_kernel(src_ref, pos_ref, w_ref, o_ref):
    # src/pos rows are (seq, batch) pairs: row r = s * BATCH + b.  R = SEQ * BATCH.
    src = src_ref[...]                      # (R, D) f32
    pos = pos_ref[...]                      # (R, D)
    x = src + pos                           # q = k = src + pos ; value = src
    R, D = src.shape

    # Free static slices of the single packed weight slab (sublane offsets only).
    wq = w_ref[OFF_WQ:OFF_WQ + D, :D]       # scale already folded in
    wk = w_ref[OFF_WK:OFF_WK + D, :D]
    wv = w_ref[OFF_WV:OFF_WV + D, :D]
    wo = w_ref[OFF_WO:OFF_WO + D, :D]
    w1 = w_ref[OFF_W1:OFF_W1 + D, :DFF]
    w2 = w_ref[OFF_W2:OFF_W2 + DFF, :D]

    def vrow(r, n=D):
        return w_ref[OFF_VEC + r:OFF_VEC + r + 1, :n]    # (1, n)

    # All-batch projections: full (R, D) x (D, D) MXU matmuls.
    q = jnp.dot(x, wq, preferred_element_type=jnp.float32) + vrow(ROW_BQ)
    k = jnp.dot(x, wk, preferred_element_type=jnp.float32) + vrow(ROW_BK)
    v = jnp.dot(src, wv, preferred_element_type=jnp.float32) + vrow(ROW_BV)

    # Precomputed additive cross-batch mask (0 same-batch, -1e30 otherwise).
    mask_add = w_ref[OFF_MASK:OFF_MASK + R, :R]          # (R, R)

    attn = jnp.zeros((R, D), jnp.float32)
    for h in range(NHEAD):                  # static unroll; no slicing / concat
        hmask = vrow(ROW_HM0 + h)           # (1, D) 0/1 mask of head-h lanes
        qh = q * hmask                      # only head-h columns contribute
        vh = v * hmask                      # output lands in head-h columns
        # scores = qh @ k.T without an explicit XLU transpose.
        s = jax.lax.dot_general(qh, k, (((1,), (1,)), ((), ())),
                                preferred_element_type=jnp.float32)   # (R, R)
        s = s + mask_add                    # no cross-batch attention
        s = s - jnp.max(s, axis=-1, keepdims=True)
        p = jnp.exp(s)
        p = p * pl.reciprocal(jnp.sum(p, axis=-1, keepdims=True), approx=True)
        attn = attn + jnp.dot(p, vh, preferred_element_type=jnp.float32)

    # out_proj
    attn = jnp.dot(attn, wo, preferred_element_type=jnp.float32) + vrow(ROW_BO)

    # residual + norm1   (dropout1 identity in eval mode)
    h1 = _layer_norm(src + attn, vrow(ROW_G1), vrow(ROW_BE1))

    # FFN: linear1 -> relu -> (dropout) -> linear2
    ff = jnp.dot(h1, w1, preferred_element_type=jnp.float32) + vrow(ROW_B1, DFF)
    ff = jnp.maximum(ff, 0.0)
    ff = jnp.dot(ff, w2, preferred_element_type=jnp.float32) + vrow(ROW_B2)

    # residual + norm2   (dropout2 identity in eval mode)
    out = _layer_norm(h1 + ff, vrow(ROW_G2), vrow(ROW_BE2))
    o_ref[...] = out.astype(o_ref.dtype)


@jax.jit
def transformer_encoder_layer(src_sbd, pos_sbd, slab):
    """src_sbd, pos_sbd: (S, B, D) float32 — PyTorch MultiheadAttention layout."""
    S, B, D = src_sbd.shape
    R = S * B
    # Merge-reshape only (no transpose): rows ordered (seq, batch), batch fastest.
    src = src_sbd.reshape(R, D)
    pos = pos_sbd.reshape(R, D)

    vmem = pl.BlockSpec(memory_space=pltpu.MemorySpace.VMEM)
    out = pl.pallas_call(
        encoder_layer_kernel,
        out_shape=jax.ShapeDtypeStruct((R, D), src_sbd.dtype),
        in_specs=[vmem, vmem, vmem],        # src, pos, packed weight slab
        out_specs=vmem,
    )(src, pos, slab)

    return out.reshape(S, B, D)             # free reshape back to (S, B, D)


def make_params(key):
    """Raw parameters in PyTorch conventions (y = x @ W.T + b)."""
    ks = jax.random.split(key, 12)
    s = 0.02
    in_w = jax.random.normal(ks[0], (3 * D_MODEL, D_MODEL), jnp.float32) * s
    in_b = jax.random.normal(ks[1], (3 * D_MODEL,), jnp.float32) * s
    wq, wk, wv = jnp.split(in_w, 3, axis=0)
    bq, bk, bv = jnp.split(in_b, 3)
    wo = jax.random.normal(ks[2], (D_MODEL, D_MODEL), jnp.float32) * s
    bo = jax.random.normal(ks[3], (D_MODEL,), jnp.float32) * s
    w1 = jax.random.normal(ks[4], (DFF, D_MODEL), jnp.float32) * s
    b1 = jax.random.normal(ks[5], (DFF,), jnp.float32) * s
    w2 = jax.random.normal(ks[6], (D_MODEL, DFF), jnp.float32) * s
    b2 = jax.random.normal(ks[7], (D_MODEL,), jnp.float32) * s
    g1 = 1.0 + 0.1 * jax.random.normal(ks[8], (D_MODEL,), jnp.float32)
    be1 = 0.1 * jax.random.normal(ks[9], (D_MODEL,), jnp.float32)
    g2 = 1.0 + 0.1 * jax.random.normal(ks[10], (D_MODEL,), jnp.float32)
    be2 = 0.1 * jax.random.normal(ks[11], (D_MODEL,), jnp.float32)
    return dict(wq=wq, wk=wk, wv=wv, bq=bq, bk=bk, bv=bv, wo=wo, bo=bo,
                w1=w1, b1=b1, w2=w2, b2=b2, g1=g1, be1=be1, g2=g2, be2=be2)


def pack_params(p):
    """One-time pack: all parameters + constant masks -> a single (256,128) f32 slab.

    Folds 1/sqrt(head_dim) into Wq/bq.  On v6e/v7x the weight rows could be stored
    bf16 (halved DMA, native MXU rate) with the test tolerance relaxed to ~1e-2.
    """
    att_scale = 1.0 / math.sqrt(HEAD_DIM)
    slab = jnp.zeros((SLAB_ROWS, SLAB_COLS), jnp.float32)

    slab = slab.at[OFF_WQ:OFF_WQ + D_MODEL, :D_MODEL].set(p["wq"].T * att_scale)
    slab = slab.at[OFF_WK:OFF_WK + D_MODEL, :D_MODEL].set(p["wk"].T)
    slab = slab.at[OFF_WV:OFF_WV + D_MODEL, :D_MODEL].set(p["wv"].T)
    slab = slab.at[OFF_WO:OFF_WO + D_MODEL, :D_MODEL].set(p["wo"].T)
    slab = slab.at[OFF_W1:OFF_W1 + D_MODEL, :DFF].set(p["w1"].T)
    slab = slab.at[OFF_W2:OFF_W2 + DFF, :D_MODEL].set(p["w2"].T)

    vec_rows = [(ROW_BQ, p["bq"] * att_scale), (ROW_BK, p["bk"]), (ROW_BV, p["bv"]),
                (ROW_BO, p["bo"]), (ROW_B2, p["b2"]), (ROW_G1, p["g1"]),
                (ROW_BE1, p["be1"]), (ROW_G2, p["g2"]), (ROW_BE2, p["be2"])]
    for r, val in vec_rows:
        slab = slab.at[OFF_VEC + r, :D_MODEL].set(val)
    slab = slab.at[OFF_VEC + ROW_B1, :DFF].set(p["b1"])

    # Per-head 0/1 lane masks (used as q*mask / v*mask inside the kernel).
    lane = jnp.arange(D_MODEL)
    for h in range(NHEAD):
        m = ((lane >= h * HEAD_DIM) & (lane < (h + 1) * HEAD_DIM)).astype(jnp.float32)
        slab = slab.at[OFF_VEC + ROW_HM0 + h, :D_MODEL].set(m)

    # Additive cross-batch attention mask for rows ordered r = s * BATCH + b.
    R = SEQ * BATCH
    ri = jnp.arange(R)[:, None] % BATCH
    ci = jnp.arange(R)[None, :] % BATCH
    mask = jnp.where(ri == ci, 0.0, NEG_BIG).astype(jnp.float32)
    slab = slab.at[OFF_MASK:OFF_MASK + R, :R].set(mask)
    return slab


def reference_forward(src_sbd, pos_sbd, p):
    """Pure-JAX reference matching PyTorch forward_post semantics (eval mode)."""
    x = jnp.transpose(src_sbd, (1, 0, 2))   # (B, S, D)
    pos = jnp.transpose(pos_sbd, (1, 0, 2))
    qk_in = x + pos

    q = qk_in @ p["wq"].T + p["bq"]
    k = qk_in @ p["wk"].T + p["bk"]
    v = x @ p["wv"].T + p["bv"]

    B, S, D = x.shape
    qh = q.reshape(B, S, NHEAD, HEAD_DIM).transpose(0, 2, 1, 3)
    kh = k.reshape(B, S, NHEAD, HEAD_DIM).transpose(0, 2, 1, 3)
    vh = v.reshape(B, S, NHEAD, HEAD_DIM).transpose(0, 2, 1, 3)
    scores = jnp.einsum("bhqd,bhkd->bhqk", qh, kh) / math.sqrt(HEAD_DIM)
    attn = jax.nn.softmax(scores, axis=-1)
    o = jnp.einsum("bhqk,bhkd->bhqd", attn, vh).transpose(0, 2, 1, 3).reshape(B, S, D)
    o = o @ p["wo"].T + p["bo"]

    def ln(a, g, b):
        m = a.mean(-1, keepdims=True)
        var = ((a - m) ** 2).mean(-1, keepdims=True)
        return (a - m) / jnp.sqrt(var + EPS) * g + b

    h1 = ln(x + o, p["g1"], p["be1"])
    ff = jnp.maximum(h1 @ p["w1"].T + p["b1"], 0.0)
    ff = ff @ p["w2"].T + p["b2"]
    out = ln(h1 + ff, p["g2"], p["be2"])
    return out.transpose(1, 0, 2)            # (S, B, D)


if __name__ == "__main__":
    key = jax.random.PRNGKey(0)
    k_src, k_pos, k_par = jax.random.split(key, 3)

    src = jax.random.normal(k_src, (SEQ, BATCH, D_MODEL), jnp.float32)
    pos = jax.random.normal(k_pos, (SEQ, BATCH, D_MODEL), jnp.float32)
    raw = make_params(k_par)
    slab = pack_params(raw)

    out = transformer_encoder_layer(src, pos, slab)
    out = jax.block_until_ready(out)

    ref = reference_forward(src, pos, raw)
    assert out.shape == (SEQ, BATCH, D_MODEL)
    max_err = float(jnp.max(jnp.abs(out - ref)))
    # Tolerance slightly relaxed vs. exact f32 because the softmax denominator uses
    # the approximate EUP reciprocal; errors are strongly attenuated by out_proj.
    assert jnp.allclose(out, ref, atol=1e-3, rtol=1e-3), \
        f"mismatch vs JAX reference (max abs err {max_err})"

    print("KERNEL_OK")
</pallas_src>

<mosaic_0001>
module attributes {stable_mosaic.version = 11 : i64} {
  func.func @encoder_layer_kernel(%arg0: memref<16x32xf32, #tpu.memory_space<vmem>>, %arg1: memref<16x32xf32, #tpu.memory_space<vmem>>, %arg2: memref<256x128xf32, #tpu.memory_space<vmem>>, %arg3: memref<16x32xf32, #tpu.memory_space<vmem>>) attributes {dimension_semantics = [], scalar_prefetch = 0 : i64, scratch_operands = 0 : i64, tpu.core_type = #tpu.core_type<tc>} {
    %c0 = arith.constant 0 : index
    %c0_0 = arith.constant 0 : index
    %0 = vector.load %arg0[%c0, %c0_0] : memref<16x32xf32, #tpu.memory_space<vmem>>, vector<16x32xf32>
    %c0_1 = arith.constant 0 : index
    %c0_2 = arith.constant 0 : index
    %1 = vector.load %arg1[%c0_1, %c0_2] : memref<16x32xf32, #tpu.memory_space<vmem>>, vector<16x32xf32>
    %2 = arith.addf %0, %1 : vector<16x32xf32>
    %c0_3 = arith.constant 0 : index
    %c0_4 = arith.constant 0 : index
    %3 = vector.load %arg2[%c0_3, %c0_4] : memref<256x128xf32, #tpu.memory_space<vmem>>, vector<32x32xf32>
    %c32 = arith.constant 32 : index
    %c0_5 = arith.constant 0 : index
    %4 = vector.load %arg2[%c32, %c0_5] : memref<256x128xf32, #tpu.memory_space<vmem>>, vector<32x32xf32>
    %c64 = arith.constant 64 : index
    %c0_6 = arith.constant 0 : index
    %5 = vector.load %arg2[%c64, %c0_6] : memref<256x128xf32, #tpu.memory_space<vmem>>, vector<32x32xf32>
    %c96 = arith.constant 96 : index
    %c0_7 = arith.constant 0 : index
    %6 = vector.load %arg2[%c96, %c0_7] : memref<256x128xf32, #tpu.memory_space<vmem>>, vector<32x32xf32>
    %c128 = arith.constant 128 : index
    %c0_8 = arith.constant 0 : index
    %7 = vector.load %arg2[%c128, %c0_8] : memref<256x128xf32, #tpu.memory_space<vmem>>, vector<32x64xf32>
    %c160 = arith.constant 160 : index
    %c0_9 = arith.constant 0 : index
    %8 = vector.load %arg2[%c160, %c0_9] : memref<256x128xf32, #tpu.memory_space<vmem>>, vector<64x32xf32>
    %cst = arith.constant dense<0.000000e+00> : vector<16x32xf32>
    %9 = tpu.matmul %2, %3, %cst {dimension_numbers = #tpu.dot_dimension_numbers<[1], [0], [0], [1], [0, 0, 1, 1], [], []>} : vector<16x32xf32>, vector<32x32xf32>, vector<16x32xf32> -> vector<16x32xf32>
    %c224 = arith.constant 224 : index
    %c0_10 = arith.constant 0 : index
    %10 = vector.load %arg2[%c224, %c0_10] : memref<256x128xf32, #tpu.memory_space<vmem>>, vector<1x32xf32>
    %11 = vector.broadcast %10 : vector<1x32xf32> to vector<16x32xf32>
    %12 = arith.addf %9, %11 : vector<16x32xf32>
    %cst_11 = arith.constant dense<0.000000e+00> : vector<16x32xf32>
    %13 = tpu.matmul %2, %4, %cst_11 {dimension_numbers = #tpu.dot_dimension_numbers<[1], [0], [0], [1], [0, 0, 1, 1], [], []>} : vector<16x32xf32>, vector<32x32xf32>, vector<16x32xf32> -> vector<16x32xf32>
    %c225 = arith.constant 225 : index
    %c0_12 = arith.constant 0 : index
    %14 = vector.load %arg2[%c225, %c0_12] : memref<256x128xf32, #tpu.memory_space<vmem>>, vector<1x32xf32>
    %15 = vector.broadcast %14 : vector<1x32xf32> to vector<16x32xf32>
    %16 = arith.addf %13, %15 : vector<16x32xf32>
    %cst_13 = arith.constant dense<0.000000e+00> : vector<16x32xf32>
    %17 = tpu.matmul %0, %5, %cst_13 {dimension_numbers = #tpu.dot_dimension_numbers<[1], [0], [0], [1], [0, 0, 1, 1], [], []>} : vector<16x32xf32>, vector<32x32xf32>, vector<16x32xf32> -> vector<16x32xf32>
    %c226 = arith.constant 226 : index
    %c0_14 = arith.constant 0 : index
    %18 = vector.load %arg2[%c226, %c0_14] : memref<256x128xf32, #tpu.memory_space<vmem>>, vector<1x32xf32>
    %19 = vector.broadcast %18 : vector<1x32xf32> to vector<16x32xf32>
    %20 = arith.addf %17, %19 : vector<16x32xf32>
    %c240 = arith.constant 240 : index
    %c0_15 = arith.constant 0 : index
    %21 = vector.load %arg2[%c240, %c0_15] : memref<256x128xf32, #tpu.memory_space<vmem>>, vector<16x16xf32>
    %cst_16 = arith.constant 0.000000e+00 : f32
    %22 = vector.broadcast %cst_16 : f32 to vector<16x32xf32>
    %c234 = arith.constant 234 : index
    %c0_17 = arith.constant 0 : index
    %23 = vector.load %arg2[%c234, %c0_17] : memref<256x128xf32, #tpu.memory_space<vmem>>, vector<1x32xf32>
    %24 = vector.broadcast %23 : vector<1x32xf32> to vector<16x32xf32>
    %25 = arith.mulf %12, %24 : vector<16x32xf32>
    %26 = vector.broadcast %23 : vector<1x32xf32> to vector<16x32xf32>
    %27 = arith.mulf %20, %26 : vector<16x32xf32>
    %cst_18 = arith.constant dense<0.000000e+00> : vector<16x16xf32>
    %28 = tpu.matmul %25, %16, %cst_18 {dimension_numbers = #tpu.dot_dimension_numbers<[1], [1], [0], [0], [0, 0, 1, 0], [], []>} : vector<16x32xf32>, vector<16x32xf32>, vector<16x16xf32> -> vector<16x16xf32>
    %29 = arith.addf %28, %21 : vector<16x16xf32>
    %cst_19 = arith.constant dense<0xFF800000> : vector<16xf32>
    %30 = vector.multi_reduction <maximumf>, %29, %cst_19 [1] : vector<16x16xf32> to vector<16xf32>
    %31 = vector.shape_cast %30 : vector<16xf32> to vector<16x1xf32>
    %32 = vector.broadcast %31 : vector<16x1xf32> to vector<16x16xf32>
    %33 = arith.subf %29, %32 : vector<16x16xf32>
    %34 = math.exp %33 : vector<16x16xf32>
    %cst_20 = arith.constant dense<0.000000e+00> : vector<16xf32>
    %35 = vector.multi_reduction <add>, %34, %cst_20 [1] : vector<16x16xf32> to vector<16xf32>
    %36 = vector.shape_cast %35 : vector<16xf32> to vector<16x1xf32>
    %37 = tpu.reciprocal %36 {approx = true} : vector<16x1xf32> -> vector<16x1xf32>
    %38 = vector.broadcast %37 : vector<16x1xf32> to vector<16x16xf32>
    %39 = arith.mulf %34, %38 : vector<16x16xf32>
    %cst_21 = arith.constant dense<0.000000e+00> : vector<16x32xf32>
    %40 = tpu.matmul %39, %27, %cst_21 {dimension_numbers = #tpu.dot_dimension_numbers<[1], [0], [0], [1], [0, 0, 1, 1], [], []>} : vector<16x16xf32>, vector<16x32xf32>, vector<16x32xf32> -> vector<16x32xf32>
    %41 = arith.addf %22, %40 : vector<16x32xf32>
    %c235 = arith.constant 235 : index
    %c0_22 = arith.constant 0 : index
    %42 = vector.load %arg2[%c235, %c0_22] : memref<256x128xf32, #tpu.memory_space<vmem>>, vector<1x32xf32>
    %43 = vector.broadcast %42 : vector<1x32xf32> to vector<16x32xf32>
    %44 = arith.mulf %12, %43 : vector<16x32xf32>
    %45 = vector.broadcast %42 : vector<1x32xf32> to vector<16x32xf32>
    %46 = arith.mulf %20, %45 : vector<16x32xf32>
    %cst_23 = arith.constant dense<0.000000e+00> : vector<16x16xf32>
    %47 = tpu.matmul %44, %16, %cst_23 {dimension_numbers = #tpu.dot_dimension_numbers<[1], [1], [0], [0], [0, 0, 1, 0], [], []>} : vector<16x32xf32>, vector<16x32xf32>, vector<16x16xf32> -> vector<16x16xf32>
    %48 = arith.addf %47, %21 : vector<16x16xf32>
    %cst_24 = arith.constant dense<0xFF800000> : vector<16xf32>
    %49 = vector.multi_reduction <maximumf>, %48, %cst_24 [1] : vector<16x16xf32> to vector<16xf32>
    %50 = vector.shape_cast %49 : vector<16xf32> to vector<16x1xf32>
    %51 = vector.broadcast %50 : vector<16x1xf32> to vector<16x16xf32>
    %52 = arith.subf %48, %51 : vector<16x16xf32>
    %53 = math.exp %52 : vector<16x16xf32>
    %cst_25 = arith.constant dense<0.000000e+00> : vector<16xf32>
    %54 = vector.multi_reduction <add>, %53, %cst_25 [1] : vector<16x16xf32> to vector<16xf32>
    %55 = vector.shape_cast %54 : vector<16xf32> to vector<16x1xf32>
    %56 = tpu.reciprocal %55 {approx = true} : vector<16x1xf32> -> vector<16x1xf32>
    %57 = vector.broadcast %56 : vector<16x1xf32> to vector<16x16xf32>
    %58 = arith.mulf %53, %57 : vector<16x16xf32>
    %cst_26 = arith.constant dense<0.000000e+00> : vector<16x32xf32>
    %59 = tpu.matmul %58, %46, %cst_26 {dimension_numbers = #tpu.dot_dimension_numbers<[1], [0], [0], [1], [0, 0, 1, 1], [], []>} : vector<16x16xf32>, vector<16x32xf32>, vector<16x32xf32> -> vector<16x32xf32>
    %60 = arith.addf %41, %59 : vector<16x32xf32>
    %c236 = arith.constant 236 : index
    %c0_27 = arith.constant 0 : index
    %61 = vector.load %arg2[%c236, %c0_27] : memref<256x128xf32, #tpu.memory_space<vmem>>, vector<1x32xf32>
    %62 = vector.broadcast %61 : vector<1x32xf32> to vector<16x32xf32>
    %63 = arith.mulf %12, %62 : vector<16x32xf32>
    %64 = vector.broadcast %61 : vector<1x32xf32> to vector<16x32xf32>
    %65 = arith.mulf %20, %64 : vector<16x32xf32>
    %cst_28 = arith.constant dense<0.000000e+00> : vector<16x16xf32>
    %66 = tpu.matmul %63, %16, %cst_28 {dimension_numbers = #tpu.dot_dimension_numbers<[1], [1], [0], [0], [0, 0, 1, 0], [], []>} : vector<16x32xf32>, vector<16x32xf32>, vector<16x16xf32> -> vector<16x16xf32>
    %67 = arith.addf %66, %21 : vector<16x16xf32>
    %cst_29 = arith.constant dense<0xFF800000> : vector<16xf32>
    %68 = vector.multi_reduction <maximumf>, %67, %cst_29 [1] : vector<16x16xf32> to vector<16xf32>
    %69 = vector.shape_cast %68 : vector<16xf32> to vector<16x1xf32>
    %70 = vector.broadcast %69 : vector<16x1xf32> to vector<16x16xf32>
    %71 = arith.subf %67, %70 : vector<16x16xf32>
    %72 = math.exp %71 : vector<16x16xf32>
    %cst_30 = arith.constant dense<0.000000e+00> : vector<16xf32>
    %73 = vector.multi_reduction <add>, %72, %cst_30 [1] : vector<16x16xf32> to vector<16xf32>
    %74 = vector.shape_cast %73 : vector<16xf32> to vector<16x1xf32>
    %75 = tpu.reciprocal %74 {approx = true} : vector<16x1xf32> -> vector<16x1xf32>
    %76 = vector.broadcast %75 : vector<16x1xf32> to vector<16x16xf32>
    %77 = arith.mulf %72, %76 : vector<16x16xf32>
    %cst_31 = arith.constant dense<0.000000e+00> : vector<16x32xf32>
    %78 = tpu.matmul %77, %65, %cst_31 {dimension_numbers = #tpu.dot_dimension_numbers<[1], [0], [0], [1], [0, 0, 1, 1], [], []>} : vector<16x16xf32>, vector<16x32xf32>, vector<16x32xf32> -> vector<16x32xf32>
    %79 = arith.addf %60, %78 : vector<16x32xf32>
    %c237 = arith.constant 237 : index
    %c0_32 = arith.constant 0 : index
    %80 = vector.load %arg2[%c237, %c0_32] : memref<256x128xf32, #tpu.memory_space<vmem>>, vector<1x32xf32>
    %81 = vector.broadcast %80 : vector<1x32xf32> to vector<16x32xf32>
    %82 = arith.mulf %12, %81 : vector<16x32xf32>
    %83 = vector.broadcast %80 : vector<1x32xf32> to vector<16x32xf32>
    %84 = arith.mulf %20, %83 : vector<16x32xf32>
    %cst_33 = arith.constant dense<0.000000e+00> : vector<16x16xf32>
    %85 = tpu.matmul %82, %16, %cst_33 {dimension_numbers = #tpu.dot_dimension_numbers<[1], [1], [0], [0], [0, 0, 1, 0], [], []>} : vector<16x32xf32>, vector<16x32xf32>, vector<16x16xf32> -> vector<16x16xf32>
    %86 = arith.addf %85, %21 : vector<16x16xf32>
    %cst_34 = arith.constant dense<0xFF800000> : vector<16xf32>
    %87 = vector.multi_reduction <maximumf>, %86, %cst_34 [1] : vector<16x16xf32> to vector<16xf32>
    %88 = vector.shape_cast %87 : vector<16xf32> to vector<16x1xf32>
    %89 = vector.broadcast %88 : vector<16x1xf32> to vector<16x16xf32>
    %90 = arith.subf %86, %89 : vector<16x16xf32>
    %91 = math.exp %90 : vector<16x16xf32>
    %cst_35 = arith.constant dense<0.000000e+00> : vector<16xf32>
    %92 = vector.multi_reduction <add>, %91, %cst_35 [1] : vector<16x16xf32> to vector<16xf32>
    %93 = vector.shape_cast %92 : vector<16xf32> to vector<16x1xf32>
    %94 = tpu.reciprocal %93 {approx = true} : vector<16x1xf32> -> vector<16x1xf32>
    %95 = vector.broadcast %94 : vector<16x1xf32> to vector<16x16xf32>
    %96 = arith.mulf %91, %95 : vector<16x16xf32>
    %cst_36 = arith.constant dense<0.000000e+00> : vector<16x32xf32>
    %97 = tpu.matmul %96, %84, %cst_36 {dimension_numbers = #tpu.dot_dimension_numbers<[1], [0], [0], [1], [0, 0, 1, 1], [], []>} : vector<16x16xf32>, vector<16x32xf32>, vector<16x32xf32> -> vector<16x32xf32>
    %98 = arith.addf %79, %97 : vector<16x32xf32>
    %cst_37 = arith.constant dense<0.000000e+00> : vector<16x32xf32>
    %99 = tpu.matmul %98, %6, %cst_37 {dimension_numbers = #tpu.dot_dimension_numbers<[1], [0], [0], [1], [0, 0, 1, 1], [], []>} : vector<16x32xf32>, vector<32x32xf32>, vector<16x32xf32> -> vector<16x32xf32>
    %c227 = arith.constant 227 : index
    %c0_38 = arith.constant 0 : index
    %100 = vector.load %arg2[%c227, %c0_38] : memref<256x128xf32, #tpu.memory_space<vmem>>, vector<1x32xf32>
    %101 = vector.broadcast %100 : vector<1x32xf32> to vector<16x32xf32>
    %102 = arith.addf %99, %101 : vector<16x32xf32>
    %103 = arith.addf %0, %102 : vector<16x32xf32>
    %c229 = arith.constant 229 : index
    %c0_39 = arith.constant 0 : index
    %104 = vector.load %arg2[%c229, %c0_39] : memref<256x128xf32, #tpu.memory_space<vmem>>, vector<1x32xf32>
    %c230 = arith.constant 230 : index
    %c0_40 = arith.constant 0 : index
    %105 = vector.load %arg2[%c230, %c0_40] : memref<256x128xf32, #tpu.memory_space<vmem>>, vector<1x32xf32>
    %cst_41 = arith.constant dense<0.000000e+00> : vector<16xf32>
    %106 = vector.multi_reduction <add>, %103, %cst_41 [1] : vector<16x32xf32> to vector<16xf32>
    %107 = vector.shape_cast %106 : vector<16xf32> to vector<16x1xf32>
    %cst_42 = arith.constant 3.200000e+01 : f32
    %108 = vector.broadcast %cst_42 : f32 to vector<16x1xf32>
    %109 = arith.divf %107, %108 : vector<16x1xf32>
    %110 = vector.broadcast %109 : vector<16x1xf32> to vector<16x32xf32>
    %111 = arith.subf %103, %110 : vector<16x32xf32>
    %112 = arith.mulf %111, %111 : vector<16x32xf32>
    %cst_43 = arith.constant dense<0.000000e+00> : vector<16xf32>
    %113 = vector.multi_reduction <add>, %112, %cst_43 [1] : vector<16x32xf32> to vector<16xf32>
    %114 = vector.shape_cast %113 : vector<16xf32> to vector<16x1xf32>
    %cst_44 = arith.constant 3.200000e+01 : f32
    %115 = vector.broadcast %cst_44 : f32 to vector<16x1xf32>
    %116 = arith.divf %114, %115 : vector<16x1xf32>
    %117 = vector.broadcast %109 : vector<16x1xf32> to vector<16x32xf32>
    %118 = arith.subf %103, %117 : vector<16x32xf32>
    %cst_45 = arith.constant 9.99999974E-6 : f32
    %119 = vector.broadcast %cst_45 : f32 to vector<16x1xf32>
    %120 = arith.addf %116, %119 : vector<16x1xf32>
    %121 = math.rsqrt %120 : vector<16x1xf32>
    %122 = vector.broadcast %121 : vector<16x1xf32> to vector<16x32xf32>
    %123 = arith.mulf %118, %122 : vector<16x32xf32>
    %124 = vector.broadcast %104 : vector<1x32xf32> to vector<16x32xf32>
    %125 = arith.mulf %123, %124 : vector<16x32xf32>
    %126 = vector.broadcast %105 : vector<1x32xf32> to vector<16x32xf32>
    %127 = arith.addf %125, %126 : vector<16x32xf32>
    %cst_46 = arith.constant dense<0.000000e+00> : vector<16x64xf32>
    %128 = tpu.matmul %127, %7, %cst_46 {dimension_numbers = #tpu.dot_dimension_numbers<[1], [0], [0], [1], [0, 0, 1, 1], [], []>} : vector<16x32xf32>, vector<32x64xf32>, vector<16x64xf32> -> vector<16x64xf32>
    %c233 = arith.constant 233 : index
    %c0_47 = arith.constant 0 : index
    %129 = vector.load %arg2[%c233, %c0_47] : memref<256x128xf32, #tpu.memory_space<vmem>>, vector<1x64xf32>
    %130 = vector.broadcast %129 : vector<1x64xf32> to vector<16x64xf32>
    %131 = arith.addf %128, %130 : vector<16x64xf32>
    %cst_48 = arith.constant 0.000000e+00 : f32
    %132 = vector.broadcast %cst_48 : f32 to vector<16x64xf32>
    %133 = arith.maximumf %131, %132 : vector<16x64xf32>
    %cst_49 = arith.constant dense<0.000000e+00> : vector<16x32xf32>
    %134 = tpu.matmul %133, %8, %cst_49 {dimension_numbers = #tpu.dot_dimension_numbers<[1], [0], [0], [1], [0, 0, 1, 1], [], []>} : vector<16x64xf32>, vector<64x32xf32>, vector<16x32xf32> -> vector<16x32xf32>
    %c228 = arith.constant 228 : index
    %c0_50 = arith.constant 0 : index
    %135 = vector.load %arg2[%c228, %c0_50] : memref<256x128xf32, #tpu.memory_space<vmem>>, vector<1x32xf32>
    %136 = vector.broadcast %135 : vector<1x32xf32> to vector<16x32xf32>
    %137 = arith.addf %134, %136 : vector<16x32xf32>
    %138 = arith.addf %127, %137 : vector<16x32xf32>
    %c231 = arith.constant 231 : index
    %c0_51 = arith.constant 0 : index
    %139 = vector.load %arg2[%c231, %c0_51] : memref<256x128xf32, #tpu.memory_space<vmem>>, vector<1x32xf32>
    %c232 = arith.constant 232 : index
    %c0_52 = arith.constant 0 : index
    %140 = vector.load %arg2[%c232, %c0_52] : memref<256x128xf32, #tpu.memory_space<vmem>>, vector<1x32xf32>
    %cst_53 = arith.constant dense<0.000000e+00> : vector<16xf32>
    %141 = vector.multi_reduction <add>, %138, %cst_53 [1] : vector<16x32xf32> to vector<16xf32>
    %142 = vector.shape_cast %141 : vector<16xf32> to vector<16x1xf32>
    %cst_54 = arith.constant 3.200000e+01 : f32
    %143 = vector.broadcast %cst_54 : f32 to vector<16x1xf32>
    %144 = arith.divf %142, %143 : vector<16x1xf32>
    %145 = vector.broadcast %144 : vector<16x1xf32> to vector<16x32xf32>
    %146 = arith.subf %138, %145 : vector<16x32xf32>
    %147 = arith.mulf %146, %146 : vector<16x32xf32>
    %cst_55 = arith.constant dense<0.000000e+00> : vector<16xf32>
    %148 = vector.multi_reduction <add>, %147, %cst_55 [1] : vector<16x32xf32> to vector<16xf32>
    %149 = vector.shape_cast %148 : vector<16xf32> to vector<16x1xf32>
    %cst_56 = arith.constant 3.200000e+01 : f32
    %150 = vector.broadcast %cst_56 : f32 to vector<16x1xf32>
    %151 = arith.divf %149, %150 : vector<16x1xf32>
    %152 = vector.broadcast %144 : vector<16x1xf32> to vector<16x32xf32>
    %153 = arith.subf %138, %152 : vector<16x32xf32>
    %cst_57 = arith.constant 9.99999974E-6 : f32
    %154 = vector.broadcast %cst_57 : f32 to vector<16x1xf32>
    %155 = arith.addf %151, %154 : vector<16x1xf32>
    %156 = math.rsqrt %155 : vector<16x1xf32>
    %157 = vector.broadcast %156 : vector<16x1xf32> to vector<16x32xf32>
    %158 = arith.mulf %153, %157 : vector<16x32xf32>
    %159 = vector.broadcast %139 : vector<1x32xf32> to vector<16x32xf32>
    %160 = arith.mulf %158, %159 : vector<16x32xf32>
    %161 = vector.broadcast %140 : vector<1x32xf32> to vector<16x32xf32>
    %162 = arith.addf %160, %161 : vector<16x32xf32>
    %c0_58 = arith.constant 0 : index
    %c0_59 = arith.constant 0 : index
    %163 = vector.load %arg3[%c0_58, %c0_59] : memref<16x32xf32, #tpu.memory_space<vmem>>, vector<16x32xf32>
    tpu.vector_store %arg3[%c0_58, %c0_59], %162 {strides = array<i32>} : memref<16x32xf32, #tpu.memory_space<vmem>>, vector<16x32xf32>,
    return
  }
}

</mosaic_0001>

<llo_original>
// kernel: transformer_encoder_layer.1
$region0: #{transformer_encoder_layer.1}
  #allocation0 [shape = 'u32[]', space=smem, size = 0x4, offset = 0x4, fixed_abs, tag = 'smem constant byte address 0x4 - core index']
  #allocation1 [shape = 'u32[144,128]{1,0:T(1,128)}', space=vmem, size = 0x12000, scoped, tag = 'internal scratch']
  %s0 = inlined_call_operand.hbm [shape: f32[16,32], index: 0, kind: input, shape index: {}]
  %s1 = inlined_call_operand.hbm [shape: f32[16,32], index: 1, kind: input, shape index: {}]
  %s2 = inlined_call_operand.hbm [shape: f32[256,128], index: 2, kind: input, shape index: {}]
  %s3 = inlined_call_operand.hbm [shape: f32[16,32], index: 3, kind: output, shape index: {}]
  %s4 = sld [smem:[#allocation0]]
  $region34: #{transformer_encoder_layer.1} parent=0
    _
  %s6 = ssub.s32 1, %s4
  %s7 = scalar_select 0, %s6, %s4
  $region1: #{transformer_encoder_layer.1} parent=0
    #allocation2 [shape = 'u8[8192]{0}', space=vmem, size = 0x2000, scoped, tag = 'input window, operand 0, single buffered']
    #allocation3 [shape = 's32[1]{0}', space=sflag, size = 0x4, scoped, tag = 'scoped memory for transformer_encoder_layer.1']
    #allocation4 [shape = 's32[1]{0}', space=sflag, size = 0x4, scoped, tag = 'scoped memory for transformer_encoder_layer.1']
    #allocation5 [shape = 'u8[8192]{0}', space=vmem, size = 0x2000, scoped, tag = 'input window, operand 1, single buffered']
    #allocation6 [shape = 's32[1]{0}', space=sflag, size = 0x4, scoped, tag = 'scoped memory for transformer_encoder_layer.1']
    #allocation7 [shape = 'u8[131072]{0}', space=vmem, size = 0x20000, scoped, tag = 'input window, operand 2, single buffered']
    #allocation8 [shape = 'u8[8192]{0}', space=vmem, size = 0x2000, scoped, tag = 'output window, operand 0, single buffered']
    %8 = vsyncpa [#allocation3], 0
    %9 = vsyncpa [#allocation6], 0
    %10 = vsyncpa [#allocation4], 0
    // Predicated region
    $region2: #{transformer_encoder_layer.1} parent=1 // pred_check
      _
    $region3: #{transformer_encoder_layer.1} parent=1 // pred_check_branch
      %12 = sbr.rel (0) target = $region5
    $region4: #{transformer_encoder_layer.1} parent=1 // pred_region
      %s14 = ssub.s32 256, 256
      %15 = vsyncadd [#allocation3], %s14
      %s16 = sshll.u32 [#allocation2], 4
      %s17 = int_to_ptr.vmem [resolvable:$true] %s16
      %22 = dma.hbm_to_vmem [thread:$0]  %s0, 256, %s17, [#allocation3], 128, 128, 8
    $region5: #{transformer_encoder_layer.1} parent=1 // pred_fallthru
      _
    // Predicated region
    $region6: #{transformer_encoder_layer.1} parent=1 // pred_check
      _
    $region7: #{transformer_encoder_layer.1} parent=1 // pred_check_branch
      %24 = sbr.rel (0) target = $region9
    $region8: #{transformer_encoder_layer.1} parent=1 // pred_region
      %s26 = ssub.s32 256, 256
      %27 = vsyncadd [#allocation6], %s26
      %s28 = sshll.u32 [#allocation5], 4
      %s29 = int_to_ptr.vmem [resolvable:$true] %s28
      %34 = dma.hbm_to_vmem [thread:$0]  %s1, 256, %s29, [#allocation6], 128, 128, 8
    $region9: #{transformer_encoder_layer.1} parent=1 // pred_fallthru
      _
    // Predicated region
    $region10: #{transformer_encoder_layer.1} parent=1 // pred_check
      _
    $region11: #{transformer_encoder_layer.1} parent=1 // pred_check_branch
      %36 = sbr.rel (0) target = $region13
    $region12: #{transformer_encoder_layer.1} parent=1 // pred_region
      %s38 = ssub.s32 4096, 4096
      %39 = vsyncadd [#allocation6], %s38
      %s40 = sshll.u32 [#allocation7], 4
      %s41 = int_to_ptr.vmem [resolvable:$true] %s40
      %46 = dma.hbm_to_vmem [thread:$0]  %s2, 4096, %s41, [#allocation6], 128, 128, 8
    $region13: #{transformer_encoder_layer.1} parent=1 // pred_fallthru
      _
    // Predicated region
    $region14: #{transformer_encoder_layer.1} parent=1 // pred_check
      _
    $region15: #{transformer_encoder_layer.1} parent=1 // pred_check_branch
      %48 = sbr.rel (0) target = $region17
    $region16: #{transformer_encoder_layer.1} parent=1 // pred_region
      %49 = dma.done [#allocation3], 256
    $region17: #{transformer_encoder_layer.1} parent=1 // pred_fallthru
      _
    // Predicated region
    $region18: #{transformer_encoder_layer.1} parent=1 // pred_check
      _
    $region19: #{transformer_encoder_layer.1} parent=1 // pred_check_branch
      %51 = sbr.rel (0) target = $region21
    $region20: #{transformer_encoder_layer.1} parent=1 // pred_region
      %52 = dma.done [#allocation6], 256
    $region21: #{transformer_encoder_layer.1} parent=1 // pred_fallthru
      _
    // Predicated region
    $region22: #{transformer_encoder_layer.1} parent=1 // pred_check
      _
    $region23: #{transformer_encoder_layer.1} parent=1 // pred_check_branch
      %54 = sbr.rel (0) target = $region25
    $region24: #{transformer_encoder_layer.1} parent=1 // pred_region
      %55 = dma.done [#allocation6], 4096
    $region25: #{transformer_encoder_layer.1} parent=1 // pred_fallthru
      _
    %v56 = vld [vmem:[#allocation2] sm:$0xff]
    %v57 = vld [vmem:[#allocation2 + $0x8] sm:$0xff]
    %v58 = vld [vmem:[#allocation5] sm:$0xff]
    %v59 = vld [vmem:[#allocation5 + $0x8] sm:$0xff]
    %v60 = vadd.f32 %v56, %v58
    %v61 = vadd.f32 %v57, %v59
    %v62 = vld [vmem:[#allocation7] sm:$0xff]
    %v63 = vld [vmem:[#allocation7 + $0x8] sm:$0xff]
    %v64 = vld [vmem:[#allocation7 + $0x10] sm:$0xff]
    %v65 = vld [vmem:[#allocation7 + $0x18] sm:$0xff]
    %v66 = vld [vmem:[#allocation7 + $0x20] sm:$0xff]
    %v67 = vld [vmem:[#allocation7 + $0x28] sm:$0xff]
    %v68 = vld [vmem:[#allocation7 + $0x30] sm:$0xff]
    %v69 = vld [vmem:[#allocation7 + $0x38] sm:$0xff]
    %v70 = vld [vmem:[#allocation7 + $0x40] sm:$0xff]
    %v71 = vld [vmem:[#allocation7 + $0x48] sm:$0xff]
    %v72 = vld [vmem:[#allocation7 + $0x50] sm:$0xff]
    %v73 = vld [vmem:[#allocation7 + $0x58] sm:$0xff]
    %v74 = vld [vmem:[#allocation7 + $0x60] sm:$0xff]
    %v75 = vld [vmem:[#allocation7 + $0x68] sm:$0xff]
    %v76 = vld [vmem:[#allocation7 + $0x70] sm:$0xff]
    %v77 = vld [vmem:[#allocation7 + $0x78] sm:$0xff]
    %v78 = vld [vmem:[#allocation7 + $0x80] sm:$0xff]
    %v79 = vld [vmem:[#allocation7 + $0x88] sm:$0xff]
    %v80 = vld [vmem:[#allocation7 + $0x90] sm:$0xff]
    %v81 = vld [vmem:[#allocation7 + $0x98] sm:$0xff]
    %v82 = vld [vmem:[#allocation7 + $0xa0] sm:$0xff]
    %v83 = vld [vmem:[#allocation7 + $0xa8] sm:$0xff]
    %v84 = vld [vmem:[#allocation7 + $0xb0] sm:$0xff]
    %v85 = vld [vmem:[#allocation7 + $0xb8] sm:$0xff]
    %v86 = vld [vmem:[#allocation7 + $0xc0] sm:$0xff]
    %v87 = vld [vmem:[#allocation7 + $0xc8] sm:$0xff]
    %v88 = vld [vmem:[#allocation7 + $0xd0] sm:$0xff]
    %v89 = vld [vmem:[#allocation7 + $0xd8] sm:$0xff]
    %v90 = vld [vmem:[#allocation7 + $0xe0] sm:$0x1]
    %v91 = vlaneseq
    %v92 = vshrl.u32 %v91, 7
    %v93 = vsub.s32 0, %v92
    %v94 = vrot.slane %v90, %v93
    %vm95 = vcmask 261120
    %v97 = vsel %vm95, %v60, 0
    %v100 = vsel %vm95, %v61, 0
    %102 = vmatprep.subr.mxu0 0.0
    %103 = vmatpush1.msra.mxu0 %v62
    %104 = vmatprep.subr.mxu0 0.0
    %105 = vmatpush1.msra.mxu0 %v63
    %106 = vmatprep.subr.mxu0 0.0
    %107 = vmatpush1.msra.mxu0 %v64
    %108 = vmatprep.subr.mxu0 0.0
    %109 = vmatpush1.msra.mxu0 %v65
    %110 = vmatprep.subr.mxu0 0.0
    %111 = vmatpush1.msra.mxu0 0.0
    %112 = vmatprep.subr.mxu0 0.0
    %113 = vmatpush1.msra.mxu0 0.0
    %114 = vmatprep.subr.mxu0 0.0
    %115 = vmatpush1.msra.mxu0 0.0
    %116 = vmatprep.subr.mxu0 0.0
    %117 = vmatpush1.msra.mxu0 0.0
    %118 = vmatprep.subr.mxu0 0.0
    %119 = vmatpush1.msra.mxu0 0.0
    %120 = vmatprep.subr.mxu0 0.0
    %121 = vmatpush1.msra.mxu0 0.0
    %122 = vmatprep.subr.mxu0 0.0
    %123 = vmatpush1.msra.mxu0 0.0
    %124 = vmatprep.subr.mxu0 0.0
    %125 = vmatpush1.msra.mxu0 0.0
    %126 = vmatprep.subr.mxu0 0.0
    %127 = vmatpush1.msra.mxu0 0.0
    %128 = vmatprep.subr.mxu0 0.0
    %129 = vmatpush1.msra.mxu0 0.0
    %130 = vmatprep.subr.mxu0 0.0
    %131 = vmatpush1.msra.mxu0 0.0
    %132 = vmatprep.subr.mxu0 0.0
    %133 = vmatpush1.msra.mxu0 0.0
    %134 = vmatprep.subr.mxu0 0.0
    %135 = vmatpush1.msra.mxu0 0.0
    %136 = vmatprep.subr.mxu0 0.0
    %137 = vmatpush1.msra.mxu0 0.0
    %138 = vmatprep.subr.mxu0 0.0
    %139 = vmatpush1.msra.mxu0 0.0
    %140 = vmatprep.subr.mxu0 0.0
    %141 = vmatpush1.msra.mxu0 0.0
    %142 = vmatprep.subr.mxu0 0.0
    %143 = vmatpush1.msra.mxu0 0.0
    %144 = vmatprep.subr.mxu0 0.0
    %145 = vmatpush1.msra.mxu0 0.0
    %146 = vmatprep.subr.mxu0 0.0
    %147 = vmatpush1.msra.mxu0 0.0
    %148 = vmatprep.subr.mxu0 0.0
    %149 = vmatpush1.msra.mxu0 0.0
    %150 = vmatprep.subr.mxu0 0.0
    %151 = vmatpush1.msra.mxu0 0.0
    %152 = vmatprep.subr.mxu0 0.0
    %153 = vmatpush1.msra.mxu0 0.0
    %154 = vmatprep.subr.mxu0 0.0
    %155 = vmatpush1.msra.mxu0 0.0
    %156 = vmatprep.subr.mxu0 0.0
    %157 = vmatpush1.msra.mxu0 0.0
    %158 = vmatprep.subr.mxu0 0.0
    %159 = vmatpush1.msra.mxu0 0.0
    %160 = vmatprep.subr.mxu0 0.0
    %161 = vmatpush1.msra.mxu0 0.0
    %162 = vmatprep.subr.mxu0 0.0
    %163 = vmatpush1.msra.mxu0 0.0
    %164 = vmatprep.subr.mxu0 0.0
    %165 = vmatpush1.msra.mxu0 0.0
    %166 = vmatprep.mubr.f32.mxu0 0.0
    %167 = vmatmul.mubr.f32.gmra.mrb[0].mxu0 %v97
    %v168 = vpop.f32.mrb[0].mxu0
    %v169 = vadd.f32 %v94, %v168
    %v170 = vpop.f32.mrb[0].mxu0
    %171 = vmatprep.mubr.f32.mxu0 0.0
    %172 = vmatmul.mubr.f32.gmra.mrb[0].mxu0 %v100
    %v173 = vpop.f32.mrb[0].mxu0
    %v174 = vadd.f32 %v94, %v173
    %v175 = vpop.f32.mrb[0].mxu0
    %176 = vdwg.mxu0
    %v177 = vld [vmem:[#allocation7 + $0xe1] sm:$0x1]
    %v178 = vlaneseq
    %v179 = vshrl.u32 %v178, 7
    %v180 = vsub.s32 0, %v179
    %v181 = vrot.slane %v177, %v180
    %182 = vmatprep.subr.mxu0 0.0
    %183 = vmatpush1.msra.mxu0 %v66
    %184 = vmatprep.subr.mxu0 0.0
    %185 = vmatpush1.msra.mxu0 %v67
    %186 = vmatprep.subr.mxu0 0.0
    %187 = vmatpush1.msra.mxu0 %v68
    %188 = vmatprep.subr.mxu0 0.0
    %189 = vmatpush1.msra.mxu0 %v69
    %190 = vmatprep.subr.mxu0 0.0
    %191 = vmatpush1.msra.mxu0 0.0
    %192 = vmatprep.subr.mxu0 0.0
    %193 = vmatpush1.msra.mxu0 0.0
    %194 = vmatprep.subr.mxu0 0.0
    %195 = vmatpush1.msra.mxu0 0.0
    %196 = vmatprep.subr.mxu0 0.0
    %197 = vmatpush1.msra.mxu0 0.0
    %198 = vmatprep.subr.mxu0 0.0
    %199 = vmatpush1.msra.mxu0 0.0
    %200 = vmatprep.subr.mxu0 0.0
    %201 = vmatpush1.msra.mxu0 0.0
    %202 = vmatprep.subr.mxu0 0.0
    %203 = vmatpush1.msra.mxu0 0.0
    %204 = vmatprep.subr.mxu0 0.0
    %205 = vmatpush1.msra.mxu0 0.0
    %206 = vmatprep.subr.mxu0 0.0
    %207 = vmatpush1.msra.mxu0 0.0
    %208 = vmatprep.subr.mxu0 0.0
    %209 = vmatpush1.msra.mxu0 0.0
    %210 = vmatprep.subr.mxu0 0.0
    %211 = vmatpush1.msra.mxu0 0.0
    %212 = vmatprep.subr.mxu0 0.0
    %213 = vmatpush1.msra.mxu0 0.0
    %214 = vmatprep.subr.mxu0 0.0
    %215 = vmatpush1.msra.mxu0 0.0
    %216 = vmatprep.subr.mxu0 0.0
    %217 = vmatpush1.msra.mxu0 0.0
    %218 = vmatprep.subr.mxu0 0.0
    %219 = vmatpush1.msra.mxu0 0.0
    %220 = vmatprep.subr.mxu0 0.0
    %221 = vmatpush1.msra.mxu0 0.0
    %222 = vmatprep.subr.mxu0 0.0
    %223 = vmatpush1.msra.mxu0 0.0
    %224 = vmatprep.subr.mxu0 0.0
    %225 = vmatpush1.msra.mxu0 0.0
    %226 = vmatprep.subr.mxu0 0.0
    %227 = vmatpush1.msra.mxu0 0.0
    %228 = vmatprep.subr.mxu0 0.0
    %229 = vmatpush1.msra.mxu0 0.0
    %230 = vmatprep.subr.mxu0 0.0
    %231 = vmatpush1.msra.mxu0 0.0
    %232 = vmatprep.subr.mxu0 0.0
    %233 = vmatpush1.msra.mxu0 0.0
    %234 = vmatprep.subr.mxu0 0.0
    %235 = vmatpush1.msra.mxu0 0.0
    %236 = vmatprep.subr.mxu0 0.0
    %237 = vmatpush1.msra.mxu0 0.0
    %238 = vmatprep.subr.mxu0 0.0
    %239 = vmatpush1.msra.mxu0 0.0
    %240 = vmatprep.subr.mxu0 0.0
    %241 = vmatpush1.msra.mxu0 0.0
    %242 = vmatprep.subr.mxu0 0.0
    %243 = vmatpush1.msra.mxu0 0.0
    %244 = vmatprep.subr.mxu0 0.0
    %245 = vmatpush1.msra.mxu0 0.0
    %246 = vmatprep.mubr.f32.mxu0 0.0
    %247 = vmatmul.mubr.f32.gmra.mrb[0].mxu0 %v97
    %v248 = vpop.f32.mrb[0].mxu0
    %v249 = vadd.f32 %v181, %v248
    %v250 = vpop.f32.mrb[0].mxu0
    %251 = vmatprep.mubr.f32.mxu0 0.0
    %252 = vmatmul.mubr.f32.gmra.mrb[0].mxu0 %v100
    %v253 = vpop.f32.mrb[0].mxu0
    %v254 = vadd.f32 %v181, %v253
    %v255 = vpop.f32.mrb[0].mxu0
    %256 = vdwg.mxu0
    %v257 = vld [vmem:[#allocation7 + $0xe2] sm:$0x1]
    %v258 = vlaneseq
    %v259 = vshrl.u32 %v258, 7
    %v260 = vsub.s32 0, %v259
    %v261 = vrot.slane %v257, %v260
    %v263 = vsel %vm95, %v56, 0
    %v266 = vsel %vm95, %v57, 0
    %268 = vmatprep.subr.mxu0 0.0
    %269 = vmatpush1.msra.mxu0 %v70
    %270 = vmatprep.subr.mxu0 0.0
    %271 = vmatpush1.msra.mxu0 %v71
    %272 = vmatprep.subr.mxu0 0.0
    %273 = vmatpush1.msra.mxu0 %v72
    %274 = vmatprep.subr.mxu0 0.0
    %275 = vmatpush1.msra.mxu0 %v73
    %276 = vmatprep.subr.mxu0 0.0
    %277 = vmatpush1.msra.mxu0 0.0
    %278 = vmatprep.subr.mxu0 0.0
    %279 = vmatpush1.msra.mxu0 0.0
    %280 = vmatprep.subr.mxu0 0.0
    %281 = vmatpush1.msra.mxu0 0.0
    %282 = vmatprep.subr.mxu0 0.0
    %283 = vmatpush1.msra.mxu0 0.0
    %284 = vmatprep.subr.mxu0 0.0
    %285 = vmatpush1.msra.mxu0 0.0
    %286 = vmatprep.subr.mxu0 0.0
    %287 = vmatpush1.msra.mxu0 0.0
    %288 = vmatprep.subr.mxu0 0.0
    %289 = vmatpush1.msra.mxu0 0.0
    %290 = vmatprep.subr.mxu0 0.0
    %291 = vmatpush1.msra.mxu0 0.0
    %292 = vmatprep.subr.mxu0 0.0
    %293 = vmatpush1.msra.mxu0 0.0
    %294 = vmatprep.subr.mxu0 0.0
    %295 = vmatpush1.msra.mxu0 0.0
    %296 = vmatprep.subr.mxu0 0.0
    %297 = vmatpush1.msra.mxu0 0.0
    %298 = vmatprep.subr.mxu0 0.0
    %299 = vmatpush1.msra.mxu0 0.0
    %300 = vmatprep.subr.mxu0 0.0
    %301 = vmatpush1.msra.mxu0 0.0
    %302 = vmatprep.subr.mxu0 0.0
    %303 = vmatpush1.msra.mxu0 0.0
    %304 = vmatprep.subr.mxu0 0.0
    %305 = vmatpush1.msra.mxu0 0.0
    %306 = vmatprep.subr.mxu0 0.0
    %307 = vmatpush1.msra.mxu0 0.0
    %308 = vmatprep.subr.mxu0 0.0
    %309 = vmatpush1.msra.mxu0 0.0
    %310 = vmatprep.subr.mxu0 0.0
    %311 = vmatpush1.msra.mxu0 0.0
    %312 = vmatprep.subr.mxu0 0.0
    %313 = vmatpush1.msra.mxu0 0.0
    %314 = vmatprep.subr.mxu0 0.0
    %315 = vmatpush1.msra.mxu0 0.0
    %316 = vmatprep.subr.mxu0 0.0
    %317 = vmatpush1.msra.mxu0 0.0
    %318 = vmatprep.subr.mxu0 0.0
    %319 = vmatpush1.msra.mxu0 0.0
    %320 = vmatprep.subr.mxu0 0.0
    %321 = vmatpush1.msra.mxu0 0.0
    %322 = vmatprep.subr.mxu0 0.0
    %323 = vmatpush1.msra.mxu0 0.0
    %324 = vmatprep.subr.mxu0 0.0
    %325 = vmatpush1.msra.mxu0 0.0
    %326 = vmatprep.subr.mxu0 0.0
    %327 = vmatpush1.msra.mxu0 0.0
    %328 = vmatprep.subr.mxu0 0.0
    %329 = vmatpush1.msra.mxu0 0.0
    %330 = vmatprep.subr.mxu0 0.0
    %331 = vmatpush1.msra.mxu0 0.0
    %332 = vmatprep.mubr.f32.mxu0 0.0
    %333 = vmatmul.mubr.f32.gmra.mrb[0].mxu0 %v263
    %v334 = vpop.f32.mrb[0].mxu0
    %v335 = vadd.f32 %v261, %v334
    %v336 = vpop.f32.mrb[0].mxu0
    %337 = vmatprep.mubr.f32.mxu0 0.0
    %338 = vmatmul.mubr.f32.gmra.mrb[0].mxu0 %v266
    %v339 = vpop.f32.mrb[0].mxu0
    %v340 = vadd.f32 %v261, %v339
    %v341 = vpop.f32.mrb[0].mxu0
    %342 = vdwg.mxu0
    %v343 = vld [vmem:[#allocation7 + $0xf0] sm:$0xff]
    %v344 = vld [vmem:[#allocation7 + $0xf8] sm:$0xff]
    %v345 = vld [vmem:[#allocation7 + $0xea] sm:$0x1]
    %v346 = vlaneseq
    %v347 = vshrl.u32 %v346, 7
    %v348 = vsub.s32 0, %v347
    %v349 = vrot.slane %v345, %v348
    %v350 = vmul.f32 %v169, %v349
    %v351 = vmul.f32 %v174, %v349
    %v352 = vmul.f32 %v335, %v349
    %v353 = vmul.f32 %v340, %v349
    %v355 = vsel %vm95, %v350, 0
    %v358 = vsel %vm95, %v351, 0
    %v361 = vsel %vm95, %v249, 0
    %v364 = vsel %vm95, %v254, 0
    %366 = vmatprep.subr.mxu0 0.0
    %367 = vmatpush1.xpose.msra.mxu0 %v361
    %368 = vmatprep.subr.mxu0 0.0
    %369 = vmatpush1.xpose.msra.mxu0 %v364
    %370 = vmatprep.subr.mxu0 0.0
    %371 = vmatpush1.xpose.msra.mxu0 0.0
    %372 = vmatprep.subr.mxu0 0.0
    %373 = vmatpush1.xpose.msra.mxu0 0.0
    %374 = vmatprep.subr.mxu0 0.0
    %375 = vmatpush1.xpose.msra.mxu0 0.0
    %376 = vmatprep.subr.mxu0 0.0
    %377 = vmatpush1.xpose.msra.mxu0 0.0
    %378 = vmatprep.subr.mxu0 0.0
    %379 = vmatpush1.xpose.msra.mxu0 0.0
    %380 = vmatprep.subr.mxu0 0.0
    %381 = vmatpush1.xpose.msra.mxu0 0.0
    %382 = vmatprep.subr.mxu0 0.0
    %383 = vmatpush1.xpose.msra.mxu0 0.0
    %384 = vmatprep.subr.mxu0 0.0
    %385 = vmatpush1.xpose.msra.mxu0 0.0
    %386 = vmatprep.subr.mxu0 0.0
    %387 = vmatpush1.xpose.msra.mxu0 0.0
    %388 = vmatprep.subr.mxu0 0.0
    %389 = vmatpush1.xpose.msra.mxu0 0.0
    %390 = vmatprep.subr.mxu0 0.0
    %391 = vmatpush1.xpose.msra.mxu0 0.0
    %392 = vmatprep.subr.mxu0 0.0
    %393 = vmatpush1.xpose.msra.mxu0 0.0
    %394 = vmatprep.subr.mxu0 0.0
    %395 = vmatpush1.xpose.msra.mxu0 0.0
    %396 = vmatprep.subr.mxu0 0.0
    %397 = vmatpush1.xpose.msra.mxu0 0.0
    %398 = vmatprep.subr.mxu0 0.0
    %399 = vmatpush1.xpose.msra.mxu0 0.0
    %400 = vmatprep.subr.mxu0 0.0
    %401 = vmatpush1.xpose.msra.mxu0 0.0
    %402 = vmatprep.subr.mxu0 0.0
    %403 = vmatpush1.xpose.msra.mxu0 0.0
    %404 = vmatprep.subr.mxu0 0.0
    %405 = vmatpush1.xpose.msra.mxu0 0.0
    %406 = vmatprep.subr.mxu0 0.0
    %407 = vmatpush1.xpose.msra.mxu0 0.0
    %408 = vmatprep.subr.mxu0 0.0
    %409 = vmatpush1.xpose.msra.mxu0 0.0
    %410 = vmatprep.subr.mxu0 0.0
    %411 = vmatpush1.xpose.msra.mxu0 0.0
    %412 = vmatprep.subr.mxu0 0.0
    %413 = vmatpush1.xpose.msra.mxu0 0.0
    %414 = vmatprep.subr.mxu0 0.0
    %415 = vmatpush1.xpose.msra.mxu0 0.0
    %416 = vmatprep.subr.mxu0 0.0
    %417 = vmatpush1.xpose.msra.mxu0 0.0
    %418 = vmatprep.subr.mxu0 0.0
    %419 = vmatpush1.xpose.msra.mxu0 0.0
    %420 = vmatprep.subr.mxu0 0.0
    %421 = vmatpush1.xpose.msra.mxu0 0.0
    %422 = vmatprep.subr.mxu0 0.0
    %423 = vmatpush1.xpose.msra.mxu0 0.0
    %424 = vmatprep.subr.mxu0 0.0
    %425 = vmatpush1.xpose.msra.mxu0 0.0
    %426 = vmatprep.subr.mxu0 0.0
    %427 = vmatpush1.xpose.msra.mxu0 0.0
    %428 = vmatprep.subr.mxu0 0.0
    %429 = vmatpush1.xpose.msra.mxu0 0.0
    %430 = vmatprep.mubr.f32.mxu0 0.0
    %431 = vmatmul.mubr.f32.gmra.mrb[0].mxu0 %v355
    %v432 = vpop.f32.mrb[0].mxu0
    %v433 = vadd.f32 %v343, %v432
    %v434 = vpop.f32.mrb[0].mxu0
    %435 = vmatprep.mubr.f32.mxu0 0.0
    %436 = vmatmul.mubr.f32.gmra.mrb[0].mxu0 %v358
    %v437 = vpop.f32.mrb[0].mxu0
    %v438 = vadd.f32 %v344, %v437
    %v439 = vpop.f32.mrb[0].mxu0
    %440 = vdwg.mxu0
    %vm441 = vcmask 130048
    %v442 = vsel %vm441, %v433, -inf
    %443 = vmax.xlane.f32.xlu0 %v442
    %v444 = vpop.xlane.xlu0 %443
    %v445 = vsel %vm441, %v438, -inf
    %446 = vmax.xlane.f32.xlu0 %v445
    %v447 = vpop.xlane.xlu0 %446
    %v448 = vsub.f32 %v433, %v444
    %v449 = vsub.f32 %v438, %v447
    %v450 = vmul.f32 %v448, 1.442695
    %v451 = vpow.pop %v450
    %v452 = vmul.f32 %v449, 1.442695
    %v453 = vpow.pop %v452
    %v454 = vsel %vm441, %v451, 0.0
    %455 = vadd.xlane.f32.xlu0 %v454
    %v456 = vpop.xlane.xlu0 %455
    %v457 = vsel %vm441, %v453, 0.0
    %458 = vadd.xlane.f32.xlu0 %v457
    %v459 = vpop.xlane.xlu0 %458
    %v460 = vrcp.pop %v456
    %v461 = vrcp.pop %v459
    %v462 = vmul.f32 %v451, %v460
    %v463 = vmul.f32 %v453, %v461
    %v464 = vld [vmem:[#allocation7 + $0xeb] sm:$0x1]
    %v465 = vlaneseq
    %v466 = vshrl.u32 %v465, 7
    %v467 = vsub.s32 0, %v466
    %v468 = vrot.slane %v464, %v467
    %v469 = vmul.f32 %v169, %v468
    %v470 = vmul.f32 %v174, %v468
    %v471 = vmul.f32 %v335, %v468
    %v472 = vmul.f32 %v340, %v468
    %v474 = vsel %vm95, %v469, 0
    %v477 = vsel %vm95, %v470, 0
    %479 = vmatprep.subr.mxu0 0.0
    %480 = vmatpush1.xpose.msra.mxu0 %v361
    %481 = vmatprep.subr.mxu0 0.0
    %482 = vmatpush1.xpose.msra.mxu0 %v364
    %483 = vmatprep.subr.mxu0 0.0
    %484 = vmatpush1.xpose.msra.mxu0 0.0
    %485 = vmatprep.subr.mxu0 0.0
    %486 = vmatpush1.xpose.msra.mxu0 0.0
    %487 = vmatprep.subr.mxu0 0.0
    %488 = vmatpush1.xpose.msra.mxu0 0.0
    %489 = vmatprep.subr.mxu0 0.0
    %490 = vmatpush1.xpose.msra.mxu0 0.0
    %491 = vmatprep.subr.mxu0 0.0
    %492 = vmatpush1.xpose.msra.mxu0 0.0
    %493 = vmatprep.subr.mxu0 0.0
    %494 = vmatpush1.xpose.msra.mxu0 0.0
    %495 = vmatprep.subr.mxu0 0.0
    %496 = vmatpush1.xpose.msra.mxu0 0.0
    %497 = vmatprep.subr.mxu0 0.0
    %498 = vmatpush1.xpose.msra.mxu0 0.0
    %499 = vmatprep.subr.mxu0 0.0
    %500 = vmatpush1.xpose.msra.mxu0 0.0
    %501 = vmatprep.subr.mxu0 0.0
    %502 = vmatpush1.xpose.msra.mxu0 0.0
    %503 = vmatprep.subr.mxu0 0.0
    %504 = vmatpush1.xpose.msra.mxu0 0.0
    %505 = vmatprep.subr.mxu0 0.0
    %506 = vmatpush1.xpose.msra.mxu0 0.0
    %507 = vmatprep.subr.mxu0 0.0
    %508 = vmatpush1.xpose.msra.mxu0 0.0
    %509 = vmatprep.subr.mxu0 0.0
    %510 = vmatpush1.xpose.msra.mxu0 0.0
    %511 = vmatprep.subr.mxu0 0.0
    %512 = vmatpush1.xpose.msra.mxu0 0.0
    %513 = vmatprep.subr.mxu0 0.0
    %514 = vmatpush1.xpose.msra.mxu0 0.0
    %515 = vmatprep.subr.mxu0 0.0
    %516 = vmatpush1.xpose.msra.mxu0 0.0
    %517 = vmatprep.subr.mxu0 0.0
    %518 = vmatpush1.xpose.msra.mxu0 0.0
    %519 = vmatprep.subr.mxu0 0.0
    %520 = vmatpush1.xpose.msra.mxu0 0.0
    %521 = vmatprep.subr.mxu0 0.0
    %522 = vmatpush1.xpose.msra.mxu0 0.0
    %523 = vmatprep.subr.mxu0 0.0
    %524 = vmatpush1.xpose.msra.mxu0 0.0
    %525 = vmatprep.subr.mxu0 0.0
    %526 = vmatpush1.xpose.msra.mxu0 0.0
    %527 = vmatprep.subr.mxu0 0.0
    %528 = vmatpush1.xpose.msra.mxu0 0.0
    %529 = vmatprep.subr.mxu0 0.0
    %530 = vmatpush1.xpose.msra.mxu0 0.0
    %531 = vmatprep.subr.mxu0 0.0
    %532 = vmatpush1.xpose.msra.mxu0 0.0
    %533 = vmatprep.subr.mxu0 0.0
    %534 = vmatpush1.xpose.msra.mxu0 0.0
    %535 = vmatprep.subr.mxu0 0.0
    %536 = vmatpush1.xpose.msra.mxu0 0.0
    %537 = vmatprep.subr.mxu0 0.0
    %538 = vmatpush1.xpose.msra.mxu0 0.0
    %539 = vmatprep.subr.mxu0 0.0
    %540 = vmatpush1.xpose.msra.mxu0 0.0
    %541 = vmatprep.subr.mxu0 0.0
    %542 = vmatpush1.xpose.msra.mxu0 0.0
    %543 = vmatprep.mubr.f32.mxu0 0.0
    %544 = vmatmul.mubr.f32.gmra.mrb[0].mxu0 %v474
    %v545 = vpop.f32.mrb[0].mxu0
    %v546 = vadd.f32 %v343, %v545
    %v547 = vpop.f32.mrb[0].mxu0
    %548 = vmatprep.mubr.f32.mxu0 0.0
    %549 = vmatmul.mubr.f32.gmra.mrb[0].mxu0 %v477
    %v550 = vpop.f32.mrb[0].mxu0
    %v551 = vadd.f32 %v344, %v550
    %v552 = vpop.f32.mrb[0].mxu0
    %553 = vdwg.mxu0
    %v554 = vsel %vm441, %v546, -inf
    %555 = vmax.xlane.f32.xlu0 %v554
    %v556 = vpop.xlane.xlu0 %555
    %v557 = vsel %vm441, %v551, -inf
    %558 = vmax.xlane.f32.xlu0 %v557
    %v559 = vpop.xlane.xlu0 %558
    %v560 = vsub.f32 %v546, %v556
    %v561 = vsub.f32 %v551, %v559
    %v562 = vmul.f32 %v560, 1.442695
    %v563 = vpow.pop %v562
    %v564 = vmul.f32 %v561, 1.442695
    %v565 = vpow.pop %v564
    %v566 = vsel %vm441, %v563, 0.0
    %567 = vadd.xlane.f32.xlu0 %v566
    %v568 = vpop.xlane.xlu0 %567
    %v569 = vsel %vm441, %v565, 0.0
    %570 = vadd.xlane.f32.xlu0 %v569
    %v571 = vpop.xlane.xlu0 %570
    %v572 = vrcp.pop %v568
    %v573 = vrcp.pop %v571
    %v574 = vmul.f32 %v563, %v572
    %v575 = vmul.f32 %v565, %v573
    %v577 = vsel %vm441, %v574, 0
    %v580 = vsel %vm441, %v575, 0
    %582 = vmatprep.subr.mxu0 0.0
    %583 = vmatpush1.msra.mxu0 %v471
    %584 = vmatprep.subr.mxu0 0.0
    %585 = vmatpush1.msra.mxu0 %v472
    %586 = vmatprep.subr.mxu0 0.0
    %587 = vmatpush1.msra.mxu0 0.0
    %588 = vmatprep.subr.mxu0 0.0
    %589 = vmatpush1.msra.mxu0 0.0
    %590 = vmatprep.subr.mxu0 0.0
    %591 = vmatpush1.msra.mxu0 0.0
    %592 = vmatprep.subr.mxu0 0.0
    %593 = vmatpush1.msra.mxu0 0.0
    %594 = vmatprep.subr.mxu0 0.0
    %595 = vmatpush1.msra.mxu0 0.0
    %596 = vmatprep.subr.mxu0 0.0
    %597 = vmatpush1.msra.mxu0 0.0
    %598 = vmatprep.subr.mxu0 0.0
    %599 = vmatpush1.msra.mxu0 0.0
    %600 = vmatprep.subr.mxu0 0.0
    %601 = vmatpush1.msra.mxu0 0.0
    %602 = vmatprep.subr.mxu0 0.0
    %603 = vmatpush1.msra.mxu0 0.0
    %604 = vmatprep.subr.mxu0 0.0
    %605 = vmatpush1.msra.mxu0 0.0
    %606 = vmatprep.subr.mxu0 0.0
    %607 = vmatpush1.msra.mxu0 0.0
    %608 = vmatprep.subr.mxu0 0.0
    %609 = vmatpush1.msra.mxu0 0.0
    %610 = vmatprep.subr.mxu0 0.0
    %611 = vmatpush1.msra.mxu0 0.0
    %612 = vmatprep.subr.mxu0 0.0
    %613 = vmatpush1.msra.mxu0 0.0
    %614 = vmatprep.subr.mxu0 0.0
    %615 = vmatpush1.msra.mxu0 0.0
    %616 = vmatprep.subr.mxu0 0.0
    %617 = vmatpush1.msra.mxu0 0.0
    %618 = vmatprep.subr.mxu0 0.0
    %619 = vmatpush1.msra.mxu0 0.0
    %620 = vmatprep.subr.mxu0 0.0
    %621 = vmatpush1.msra.mxu0 0.0
    %622 = vmatprep.subr.mxu0 0.0
    %623 = vmatpush1.msra.mxu0 0.0
    %624 = vmatprep.subr.mxu0 0.0
    %625 = vmatpush1.msra.mxu0 0.0
    %626 = vmatprep.subr.mxu0 0.0
    %627 = vmatpush1.msra.mxu0 0.0
    %628 = vmatprep.subr.mxu0 0.0
    %629 = vmatpush1.msra.mxu0 0.0
    %630 = vmatprep.subr.mxu0 0.0
    %631 = vmatpush1.msra.mxu0 0.0
    %632 = vmatprep.subr.mxu0 0.0
    %633 = vmatpush1.msra.mxu0 0.0
    %634 = vmatprep.subr.mxu0 0.0
    %635 = vmatpush1.msra.mxu0 0.0
    %636 = vmatprep.subr.mxu0 0.0
    %637 = vmatpush1.msra.mxu0 0.0
    %638 = vmatprep.subr.mxu0 0.0
    %639 = vmatpush1.msra.mxu0 0.0
    %640 = vmatprep.subr.mxu0 0.0
    %641 = vmatpush1.msra.mxu0 0.0
    %642 = vmatprep.subr.mxu0 0.0
    %643 = vmatpush1.msra.mxu0 0.0
    %644 = vmatprep.subr.mxu0 0.0
    %645 = vmatpush1.msra.mxu0 0.0
    %646 = vmatprep.mubr.f32.mxu0 0.0
    %647 = vmatmul.mubr.f32.gmra.mrb[0].mxu0 %v577
    %v648 = vpop.f32.mrb[0].mxu0
    %v649 = vadd.f32 0.0, %v648
    %v650 = vpop.f32.mrb[0].mxu0
    %651 = vmatprep.mubr.f32.mxu0 0.0
    %652 = vmatmul.mubr.f32.gmra.mrb[0].mxu0 %v580
    %v653 = vpop.f32.mrb[0].mxu0
    %v654 = vadd.f32 0.0, %v653
    %v655 = vpop.f32.mrb[0].mxu0
    %656 = vdwg.mxu0
    %v658 = vsel %vm441, %v462, 0
    %v661 = vsel %vm441, %v463, 0
    %663 = vmatprep.subr.mxu0 0.0
    %664 = vmatpush1.msra.mxu0 %v352
    %665 = vmatprep.subr.mxu0 0.0
    %666 = vmatpush1.msra.mxu0 %v353
    %667 = vmatprep.subr.mxu0 0.0
    %668 = vmatpush1.msra.mxu0 0.0
    %669 = vmatprep.subr.mxu0 0.0
    %670 = vmatpush1.msra.mxu0 0.0
    %671 = vmatprep.subr.mxu0 0.0
    %672 = vmatpush1.msra.mxu0 0.0
    %673 = vmatprep.subr.mxu0 0.0
    %674 = vmatpush1.msra.mxu0 0.0
    %675 = vmatprep.subr.mxu0 0.0
    %676 = vmatpush1.msra.mxu0 0.0
    %677 = vmatprep.subr.mxu0 0.0
    %678 = vmatpush1.msra.mxu0 0.0
    %679 = vmatprep.subr.mxu0 0.0
    %680 = vmatpush1.msra.mxu0 0.0
    %681 = vmatprep.subr.mxu0 0.0
    %682 = vmatpush1.msra.mxu0 0.0
    %683 = vmatprep.subr.mxu0 0.0
    %684 = vmatpush1.msra.mxu0 0.0
    %685 = vmatprep.subr.mxu0 0.0
    %686 = vmatpush1.msra.mxu0 0.0
    %687 = vmatprep.subr.mxu0 0.0
    %688 = vmatpush1.msra.mxu0 0.0
    %689 = vmatprep.subr.mxu0 0.0
    %690 = vmatpush1.msra.mxu0 0.0
    %691 = vmatprep.subr.mxu0 0.0
    %692 = vmatpush1.msra.mxu0 0.0
    %693 = vmatprep.subr.mxu0 0.0
    %694 = vmatpush1.msra.mxu0 0.0
    %695 = vmatprep.subr.mxu0 0.0
    %696 = vmatpush1.msra.mxu0 0.0
    %697 = vmatprep.subr.mxu0 0.0
    %698 = vmatpush1.msra.mxu0 0.0
    %699 = vmatprep.subr.mxu0 0.0
    %700 = vmatpush1.msra.mxu0 0.0
    %701 = vmatprep.subr.mxu0 0.0
    %702 = vmatpush1.msra.mxu0 0.0
    %703 = vmatprep.subr.mxu0 0.0
    %704 = vmatpush1.msra.mxu0 0.0
    %705 = vmatprep.subr.mxu0 0.0
    %706 = vmatpush1.msra.mxu0 0.0
    %707 = vmatprep.subr.mxu0 0.0
    %708 = vmatpush1.msra.mxu0 0.0
    %709 = vmatprep.subr.mxu0 0.0
    %710 = vmatpush1.msra.mxu0 0.0
    %711 = vmatprep.subr.mxu0 0.0
    %712 = vmatpush1.msra.mxu0 0.0
    %713 = vmatprep.subr.mxu0 0.0
    %714 = vmatpush1.msra.mxu0 0.0
    %715 = vmatprep.subr.mxu0 0.0
    %716 = vmatpush1.msra.mxu0 0.0
    %717 = vmatprep.subr.mxu0 0.0
    %718 = vmatpush1.msra.mxu0 0.0
    %719 = vmatprep.subr.mxu0 0.0
    %720 = vmatpush1.msra.mxu0 0.0
    %721 = vmatprep.subr.mxu0 0.0
    %722 = vmatpush1.msra.mxu0 0.0
    %723 = vmatprep.subr.mxu0 0.0
    %724 = vmatpush1.msra.mxu0 0.0
    %725 = vmatprep.subr.mxu0 0.0
    %726 = vmatpush1.msra.mxu0 0.0
    %727 = vmatprep.mubr.f32.mxu0 0.0
    %728 = vmatmul.mubr.f32.gmra.mrb[0].mxu0 %v658
    %v729 = vpop.f32.mrb[0].mxu0
    %v730 = vadd.f32 %v649, %v729
    %v731 = vpop.f32.mrb[0].mxu0
    %732 = vmatprep.mubr.f32.mxu0 0.0
    %733 = vmatmul.mubr.f32.gmra.mrb[0].mxu0 %v661
    %v734 = vpop.f32.mrb[0].mxu0
    %v735 = vadd.f32 %v654, %v734
    %v736 = vpop.f32.mrb[0].mxu0
    %737 = vdwg.mxu0
    %v738 = vld [vmem:[#allocation7 + $0xec] sm:$0x1]
    %v739 = vlaneseq
    %v740 = vshrl.u32 %v739, 7
    %v741 = vsub.s32 0, %v740
    %v742 = vrot.slane %v738, %v741
    %v743 = vmul.f32 %v169, %v742
    %v744 = vmul.f32 %v174, %v742
    %v745 = vmul.f32 %v335, %v742
    %v746 = vmul.f32 %v340, %v742
    %v748 = vsel %vm95, %v743, 0
    %v751 = vsel %vm95, %v744, 0
    %753 = vmatprep.subr.mxu0 0.0
    %754 = vmatpush1.xpose.msra.mxu0 %v361
    %755 = vmatprep.subr.mxu0 0.0
    %756 = vmatpush1.xpose.msra.mxu0 %v364
    %757 = vmatprep.subr.mxu0 0.0
    %758 = vmatpush1.xpose.msra.mxu0 0.0
    %759 = vmatprep.subr.mxu0 0.0
    %760 = vmatpush1.xpose.msra.mxu0 0.0
    %761 = vmatprep.subr.mxu0 0.0
    %762 = vmatpush1.xpose.msra.mxu0 0.0
    %763 = vmatprep.subr.mxu0 0.0
    %764 = vmatpush1.xpose.msra.mxu0 0.0
    %765 = vmatprep.subr.mxu0 0.0
    %766 = vmatpush1.xpose.msra.mxu0 0.0
    %767 = vmatprep.subr.mxu0 0.0
    %768 = vmatpush1.xpose.msra.mxu0 0.0
    %769 = vmatprep.subr.mxu0 0.0
    %770 = vmatpush1.xpose.msra.mxu0 0.0
    %771 = vmatprep.subr.mxu0 0.0
    %772 = vmatpush1.xpose.msra.mxu0 0.0
    %773 = vmatprep.subr.mxu0 0.0
    %774 = vmatpush1.xpose.msra.mxu0 0.0
    %775 = vmatprep.subr.mxu0 0.0
    %776 = vmatpush1.xpose.msra.mxu0 0.0
    %777 = vmatprep.subr.mxu0 0.0
    %778 = vmatpush1.xpose.msra.mxu0 0.0
    %779 = vmatprep.subr.mxu0 0.0
    %780 = vmatpush1.xpose.msra.mxu0 0.0
    %781 = vmatprep.subr.mxu0 0.0
    %782 = vmatpush1.xpose.msra.mxu0 0.0
    %783 = vmatprep.subr.mxu0 0.0
    %784 = vmatpush1.xpose.msra.mxu0 0.0
    %785 = vmatprep.subr.mxu0 0.0
    %786 = vmatpush1.xpose.msra.mxu0 0.0
    %787 = vmatprep.subr.mxu0 0.0
    %788 = vmatpush1.xpose.msra.mxu0 0.0
    %789 = vmatprep.subr.mxu0 0.0
    %790 = vmatpush1.xpose.msra.mxu0 0.0
    %791 = vmatprep.subr.mxu0 0.0
    %792 = vmatpush1.xpose.msra.mxu0 0.0
    %793 = vmatprep.subr.mxu0 0.0
    %794 = vmatpush1.xpose.msra.mxu0 0.0
    %795 = vmatprep.subr.mxu0 0.0
    %796 = vmatpush1.xpose.msra.mxu0 0.0
    %797 = vmatprep.subr.mxu0 0.0
    %798 = vmatpush1.xpose.msra.mxu0 0.0
    %799 = vmatprep.subr.mxu0 0.0
    %800 = vmatpush1.xpose.msra.mxu0 0.0
    %801 = vmatprep.subr.mxu0 0.0
    %802 = vmatpush1.xpose.msra.mxu0 0.0
    %803 = vmatprep.subr.mxu0 0.0
    %804 = vmatpush1.xpose.msra.mxu0 0.0
    %805 = vmatprep.subr.mxu0 0.0
    %806 = vmatpush1.xpose.msra.mxu0 0.0
    %807 = vmatprep.subr.mxu0 0.0
    %808 = vmatpush1.xpose.msra.mxu0 0.0
    %809 = vmatprep.subr.mxu0 0.0
    %810 = vmatpush1.xpose.msra.mxu0 0.0
    %811 = vmatprep.subr.mxu0 0.0
    %812 = vmatpush1.xpose.msra.mxu0 0.0
    %813 = vmatprep.subr.mxu0 0.0
    %814 = vmatpush1.xpose.msra.mxu0 0.0
    %815 = vmatprep.subr.mxu0 0.0
    %816 = vmatpush1.xpose.msra.mxu0 0.0
    %817 = vmatprep.mubr.f32.mxu0 0.0
    %818 = vmatmul.mubr.f32.gmra.mrb[0].mxu0 %v748
    %v819 = vpop.f32.mrb[0].mxu0
    %v820 = vadd.f32 %v343, %v819
    %v821 = vpop.f32.mrb[0].mxu0
    %822 = vmatprep.mubr.f32.mxu0 0.0
    %823 = vmatmul.mubr.f32.gmra.mrb[0].mxu0 %v751
    %v824 = vpop.f32.mrb[0].mxu0
    %v825 = vadd.f32 %v344, %v824
    %v826 = vpop.f32.mrb[0].mxu0
    %827 = vdwg.mxu0
    %v828 = vsel %vm441, %v820, -inf
    %829 = vmax.xlane.f32.xlu0 %v828
    %v830 = vpop.xlane.xlu0 %829
    %v831 = vsel %vm441, %v825, -inf
    %832 = vmax.xlane.f32.xlu0 %v831
    %v833 = vpop.xlane.xlu0 %832
    %v834 = vsub.f32 %v820, %v830
    %v835 = vsub.f32 %v825, %v833
    %v836 = vmul.f32 %v834, 1.442695
    %v837 = vpow.pop %v836
    %v838 = vmul.f32 %v835, 1.442695
    %v839 = vpow.pop %v838
    %v840 = vsel %vm441, %v837, 0.0
    %841 = vadd.xlane.f32.xlu0 %v840
    %v842 = vpop.xlane.xlu0 %841
    %v843 = vsel %vm441, %v839, 0.0
    %844 = vadd.xlane.f32.xlu0 %v843
    %v845 = vpop.xlane.xlu0 %844
    %v846 = vrcp.pop %v842
    %v847 = vrcp.pop %v845
    %v848 = vmul.f32 %v837, %v846
    %v849 = vmul.f32 %v839, %v847
    %v851 = vsel %vm441, %v848, 0
    %v854 = vsel %vm441, %v849, 0
    %856 = vmatprep.subr.mxu0 0.0
    %857 = vmatpush1.msra.mxu0 %v745
    %858 = vmatprep.subr.mxu0 0.0
    %859 = vmatpush1.msra.mxu0 %v746
    %860 = vmatprep.subr.mxu0 0.0
    %861 = vmatpush1.msra.mxu0 0.0
    %862 = vmatprep.subr.mxu0 0.0
    %863 = vmatpush1.msra.mxu0 0.0
    %864 = vmatprep.subr.mxu0 0.0
    %865 = vmatpush1.msra.mxu0 0.0
    %866 = vmatprep.subr.mxu0 0.0
    %867 = vmatpush1.msra.mxu0 0.0
    %868 = vmatprep.subr.mxu0 0.0
    %869 = vmatpush1.msra.mxu0 0.0
    %870 = vmatprep.subr.mxu0 0.0
    %871 = vmatpush1.msra.mxu0 0.0
    %872 = vmatprep.subr.mxu0 0.0
    %873 = vmatpush1.msra.mxu0 0.0
    %874 = vmatprep.subr.mxu0 0.0
    %875 = vmatpush1.msra.mxu0 0.0
    %876 = vmatprep.subr.mxu0 0.0
    %877 = vmatpush1.msra.mxu0 0.0
    %878 = vmatprep.subr.mxu0 0.0
    %879 = vmatpush1.msra.mxu0 0.0
    %880 = vmatprep.subr.mxu0 0.0
    %881 = vmatpush1.msra.mxu0 0.0
    %882 = vmatprep.subr.mxu0 0.0
    %883 = vmatpush1.msra.mxu0 0.0
    %884 = vmatprep.subr.mxu0 0.0
    %885 = vmatpush1.msra.mxu0 0.0
    %886 = vmatprep.subr.mxu0 0.0
    %887 = vmatpush1.msra.mxu0 0.0
    %888 = vmatprep.subr.mxu0 0.0
    %889 = vmatpush1.msra.mxu0 0.0
    %890 = vmatprep.subr.mxu0 0.0
    %891 = vmatpush1.msra.mxu0 0.0
    %892 = vmatprep.subr.mxu0 0.0
    %893 = vmatpush1.msra.mxu0 0.0
    %894 = vmatprep.subr.mxu0 0.0
    %895 = vmatpush1.msra.mxu0 0.0
    %896 = vmatprep.subr.mxu0 0.0
    %897 = vmatpush1.msra.mxu0 0.0
    %898 = vmatprep.subr.mxu0 0.0
    %899 = vmatpush1.msra.mxu0 0.0
    %900 = vmatprep.subr.mxu0 0.0
    %901 = vmatpush1.msra.mxu0 0.0
    %902 = vmatprep.subr.mxu0 0.0
    %903 = vmatpush1.msra.mxu0 0.0
    %904 = vmatprep.subr.mxu0 0.0
    %905 = vmatpush1.msra.mxu0 0.0
    %906 = vmatprep.subr.mxu0 0.0
    %907 = vmatpush1.msra.mxu0 0.0
    %908 = vmatprep.subr.mxu0 0.0
    %909 = vmatpush1.msra.mxu0 0.0
    %910 = vmatprep.subr.mxu0 0.0
    %911 = vmatpush1.msra.mxu0 0.0
    %912 = vmatprep.subr.mxu0 0.0
    %913 = vmatpush1.msra.mxu0 0.0
    %914 = vmatprep.subr.mxu0 0.0
    %915 = vmatpush1.msra.mxu0 0.0
    %916 = vmatprep.subr.mxu0 0.0
    %917 = vmatpush1.msra.mxu0 0.0
    %918 = vmatprep.subr.mxu0 0.0
    %919 = vmatpush1.msra.mxu0 0.0
    %920 = vmatprep.mubr.f32.mxu0 0.0
    %921 = vmatmul.mubr.f32.gmra.mrb[0].mxu0 %v851
    %v922 = vpop.f32.mrb[0].mxu0
    %v923 = vadd.f32 0.0, %v922
    %v924 = vpop.f32.mrb[0].mxu0
    %925 = vmatprep.mubr.f32.mxu0 0.0
    %926 = vmatmul.mubr.f32.gmra.mrb[0].mxu0 %v854
    %v927 = vpop.f32.mrb[0].mxu0
    %v928 = vadd.f32 0.0, %v927
    %v929 = vpop.f32.mrb[0].mxu0
    %930 = vdwg.mxu0
    %v931 = vadd.f32 %v730, %v923
    %v932 = vadd.f32 %v735, %v928
    %v933 = vld [vmem:[#allocation7 + $0xed] sm:$0x1]
    %v934 = vlaneseq
    %v935 = vshrl.u32 %v934, 7
    %v936 = vsub.s32 0, %v935
    %v937 = vrot.slane %v933, %v936
    %v938 = vmul.f32 %v169, %v937
    %v939 = vmul.f32 %v174, %v937
    %v940 = vmul.f32 %v335, %v937
    %v941 = vmul.f32 %v340, %v937
    %v943 = vsel %vm95, %v938, 0
    %v946 = vsel %vm95, %v939, 0
    %948 = vmatprep.subr.mxu0 0.0
    %949 = vmatpush1.xpose.msra.mxu0 %v361
    %950 = vmatprep.subr.mxu0 0.0
    %951 = vmatpush1.xpose.msra.mxu0 %v364
    %952 = vmatprep.subr.mxu0 0.0
    %953 = vmatpush1.xpose.msra.mxu0 0.0
    %954 = vmatprep.subr.mxu0 0.0
    %955 = vmatpush1.xpose.msra.mxu0 0.0
    %956 = vmatprep.subr.mxu0 0.0
    %957 = vmatpush1.xpose.msra.mxu0 0.0
    %958 = vmatprep.subr.mxu0 0.0
    %959 = vmatpush1.xpose.msra.mxu0 0.0
    %960 = vmatprep.subr.mxu0 0.0
    %961 = vmatpush1.xpose.msra.mxu0 0.0
    %962 = vmatprep.subr.mxu0 0.0
    %963 = vmatpush1.xpose.msra.mxu0 0.0
    %964 = vmatprep.subr.mxu0 0.0
    %965 = vmatpush1.xpose.msra.mxu0 0.0
    %966 = vmatprep.subr.mxu0 0.0
    %967 = vmatpush1.xpose.msra.mxu0 0.0
    %968 = vmatprep.subr.mxu0 0.0
    %969 = vmatpush1.xpose.msra.mxu0 0.0
    %970 = vmatprep.subr.mxu0 0.0
    %971 = vmatpush1.xpose.msra.mxu0 0.0
    %972 = vmatprep.subr.mxu0 0.0
    %973 = vmatpush1.xpose.msra.mxu0 0.0
    %974 = vmatprep.subr.mxu0 0.0
    %975 = vmatpush1.xpose.msra.mxu0 0.0
    %976 = vmatprep.subr.mxu0 0.0
    %977 = vmatpush1.xpose.msra.mxu0 0.0
    %978 = vmatprep.subr.mxu0 0.0
    %979 = vmatpush1.xpose.msra.mxu0 0.0
    %980 = vmatprep.subr.mxu0 0.0
    %981 = vmatpush1.xpose.msra.mxu0 0.0
    %982 = vmatprep.subr.mxu0 0.0
    %983 = vmatpush1.xpose.msra.mxu0 0.0
    %984 = vmatprep.subr.mxu0 0.0
    %985 = vmatpush1.xpose.msra.mxu0 0.0
    %986 = vmatprep.subr.mxu0 0.0
    %987 = vmatpush1.xpose.msra.mxu0 0.0
    %988 = vmatprep.subr.mxu0 0.0
    %989 = vmatpush1.xpose.msra.mxu0 0.0
    %990 = vmatprep.subr.mxu0 0.0
    %991 = vmatpush1.xpose.msra.mxu0 0.0
    %992 = vmatprep.subr.mxu0 0.0
    %993 = vmatpush1.xpose.msra.mxu0 0.0
    %994 = vmatprep.subr.mxu0 0.0
    %995 = vmatpush1.xpose.msra.mxu0 0.0
    %996 = vmatprep.subr.mxu0 0.0
    %997 = vmatpush1.xpose.msra.mxu0 0.0
    %998 = vmatprep.subr.mxu0 0.0
    %999 = vmatpush1.xpose.msra.mxu0 0.0
    %1000 = vmatprep.subr.mxu0 0.0
    %1001 = vmatpush1.xpose.msra.mxu0 0.0
    %1002 = vmatprep.subr.mxu0 0.0
    %1003 = vmatpush1.xpose.msra.mxu0 0.0
    %1004 = vmatprep.subr.mxu0 0.0
    %1005 = vmatpush1.xpose.msra.mxu0 0.0
    %1006 = vmatprep.subr.mxu0 0.0
    %1007 = vmatpush1.xpose.msra.mxu0 0.0
    %1008 = vmatprep.subr.mxu0 0.0
    %1009 = vmatpush1.xpose.msra.mxu0 0.0
    %1010 = vmatprep.subr.mxu0 0.0
    %1011 = vmatpush1.xpose.msra.mxu0 0.0
    %1012 = vmatprep.mubr.f32.mxu0 0.0
    %1013 = vmatmul.mubr.f32.gmra.mrb[0].mxu0 %v943
    %v1014 = vpop.f32.mrb[0].mxu0
    %v1015 = vadd.f32 %v343, %v1014
    %v1016 = vpop.f32.mrb[0].mxu0
    %1017 = vmatprep.mubr.f32.mxu0 0.0
    %1018 = vmatmul.mubr.f32.gmra.mrb[0].mxu0 %v946
    %v1019 = vpop.f32.mrb[0].mxu0
    %v1020 = vadd.f32 %v344, %v1019
    %v1021 = vpop.f32.mrb[0].mxu0
    %1022 = vdwg.mxu0
    %v1023 = vsel %vm441, %v1015, -inf
    %1024 = vmax.xlane.f32.xlu0 %v1023
    %v1025 = vpop.xlane.xlu0 %1024
    %v1026 = vsel %vm441, %v1020, -inf
    %1027 = vmax.xlane.f32.xlu0 %v1026
    %v1028 = vpop.xlane.xlu0 %1027
    %v1029 = vsub.f32 %v1015, %v1025
    %v1030 = vsub.f32 %v1020, %v1028
    %v1031 = vmul.f32 %v1029, 1.442695
    %v1032 = vpow.pop %v1031
    %v1033 = vmul.f32 %v1030, 1.442695
    %v1034 = vpow.pop %v1033
    %v1035 = vsel %vm441, %v1032, 0.0
    %1036 = vadd.xlane.f32.xlu0 %v1035
    %v1037 = vpop.xlane.xlu0 %1036
    %v1038 = vsel %vm441, %v1034, 0.0
    %1039 = vadd.xlane.f32.xlu0 %v1038
    %v1040 = vpop.xlane.xlu0 %1039
    %v1041 = vrcp.pop %v1037
    %v1042 = vrcp.pop %v1040
    %v1043 = vmul.f32 %v1032, %v1041
    %v1044 = vmul.f32 %v1034, %v1042
    %v1046 = vsel %vm441, %v1043, 0
    %v1049 = vsel %vm441, %v1044, 0
    %1051 = vmatprep.subr.mxu0 0.0
    %1052 = vmatpush1.msra.mxu0 %v940
    %1053 = vmatprep.subr.mxu0 0.0
    %1054 = vmatpush1.msra.mxu0 %v941
    %1055 = vmatprep.subr.mxu0 0.0
    %1056 = vmatpush1.msra.mxu0 0.0
    %1057 = vmatprep.subr.mxu0 0.0
    %1058 = vmatpush1.msra.mxu0 0.0
    %1059 = vmatprep.subr.mxu0 0.0
    %1060 = vmatpush1.msra.mxu0 0.0
    %1061 = vmatprep.subr.mxu0 0.0
    %1062 = vmatpush1.msra.mxu0 0.0
    %1063 = vmatprep.subr.mxu0 0.0
    %1064 = vmatpush1.msra.mxu0 0.0
    %1065 = vmatprep.subr.mxu0 0.0
    %1066 = vmatpush1.msra.mxu0 0.0
    %1067 = vmatprep.subr.mxu0 0.0
    %1068 = vmatpush1.msra.mxu0 0.0
    %1069 = vmatprep.subr.mxu0 0.0
    %1070 = vmatpush1.msra.mxu0 0.0
    %1071 = vmatprep.subr.mxu0 0.0
    %1072 = vmatpush1.msra.mxu0 0.0
    %1073 = vmatprep.subr.mxu0 0.0
    %1074 = vmatpush1.msra.mxu0 0.0
    %1075 = vmatprep.subr.mxu0 0.0
    %1076 = vmatpush1.msra.mxu0 0.0
    %1077 = vmatprep.subr.mxu0 0.0
    %1078 = vmatpush1.msra.mxu0 0.0
    %1079 = vmatprep.subr.mxu0 0.0
    %1080 = vmatpush1.msra.mxu0 0.0
    %1081 = vmatprep.subr.mxu0 0.0
    %1082 = vmatpush1.msra.mxu0 0.0
    %1083 = vmatprep.subr.mxu0 0.0
    %1084 = vmatpush1.msra.mxu0 0.0
    %1085 = vmatprep.subr.mxu0 0.0
    %1086 = vmatpush1.msra.mxu0 0.0
    %1087 = vmatprep.subr.mxu0 0.0
    %1088 = vmatpush1.msra.mxu0 0.0
    %1089 = vmatprep.subr.mxu0 0.0
    %1090 = vmatpush1.msra.mxu0 0.0
    %1091 = vmatprep.subr.mxu0 0.0
    %1092 = vmatpush1.msra.mxu0 0.0
    %1093 = vmatprep.subr.mxu0 0.0
    %1094 = vmatpush1.msra.mxu0 0.0
    %1095 = vmatprep.subr.mxu0 0.0
    %1096 = vmatpush1.msra.mxu0 0.0
    %1097 = vmatprep.subr.mxu0 0.0
    %1098 = vmatpush1.msra.mxu0 0.0
    %1099 = vmatprep.subr.mxu0 0.0
    %1100 = vmatpush1.msra.mxu0 0.0
    %1101 = vmatprep.subr.mxu0 0.0
    %1102 = vmatpush1.msra.mxu0 0.0
    %1103 = vmatprep.subr.mxu0 0.0
    %1104 = vmatpush1.msra.mxu0 0.0
    %1105 = vmatprep.subr.mxu0 0.0
    %1106 = vmatpush1.msra.mxu0 0.0
    %1107 = vmatprep.subr.mxu0 0.0
    %1108 = vmatpush1.msra.mxu0 0.0
    %1109 = vmatprep.subr.mxu0 0.0
    %1110 = vmatpush1.msra.mxu0 0.0
    %1111 = vmatprep.subr.mxu0 0.0
    %1112 = vmatpush1.msra.mxu0 0.0
    %1113 = vmatprep.subr.mxu0 0.0
    %1114 = vmatpush1.msra.mxu0 0.0
    %1115 = vmatprep.mubr.f32.mxu0 0.0
    %1116 = vmatmul.mubr.f32.gmra.mrb[0].mxu0 %v1046
    %v1117 = vpop.f32.mrb[0].mxu0
    %v1118 = vadd.f32 0.0, %v1117
    %v1119 = vpop.f32.mrb[0].mxu0
    %1120 = vmatprep.mubr.f32.mxu0 0.0
    %1121 = vmatmul.mubr.f32.gmra.mrb[0].mxu0 %v1049
    %v1122 = vpop.f32.mrb[0].mxu0
    %v1123 = vadd.f32 0.0, %v1122
    %v1124 = vpop.f32.mrb[0].mxu0
    %1125 = vdwg.mxu0
    %v1126 = vadd.f32 %v931, %v1118
    %v1127 = vadd.f32 %v932, %v1123
    %v1128 = vld [vmem:[#allocation7 + $0xe3] sm:$0x1]
    %v1129 = vlaneseq
    %v1130 = vshrl.u32 %v1129, 7
    %v1131 = vsub.s32 0, %v1130
    %v1132 = vrot.slane %v1128, %v1131
    %v1134 = vsel %vm95, %v1126, 0
    %v1137 = vsel %vm95, %v1127, 0
    %1139 = vmatprep.subr.mxu0 0.0
    %1140 = vmatpush1.msra.mxu0 %v74
    %1141 = vmatprep.subr.mxu0 0.0
    %1142 = vmatpush1.msra.mxu0 %v75
    %1143 = vmatprep.subr.mxu0 0.0
    %1144 = vmatpush1.msra.mxu0 %v76
    %1145 = vmatprep.subr.mxu0 0.0
    %1146 = vmatpush1.msra.mxu0 %v77
    %1147 = vmatprep.subr.mxu0 0.0
    %1148 = vmatpush1.msra.mxu0 0.0
    %1149 = vmatprep.subr.mxu0 0.0
    %1150 = vmatpush1.msra.mxu0 0.0
    %1151 = vmatprep.subr.mxu0 0.0
    %1152 = vmatpush1.msra.mxu0 0.0
    %1153 = vmatprep.subr.mxu0 0.0
    %1154 = vmatpush1.msra.mxu0 0.0
    %1155 = vmatprep.subr.mxu0 0.0
    %1156 = vmatpush1.msra.mxu0 0.0
    %1157 = vmatprep.subr.mxu0 0.0
    %1158 = vmatpush1.msra.mxu0 0.0
    %1159 = vmatprep.subr.mxu0 0.0
    %1160 = vmatpush1.msra.mxu0 0.0
    %1161 = vmatprep.subr.mxu0 0.0
    %1162 = vmatpush1.msra.mxu0 0.0
    %1163 = vmatprep.subr.mxu0 0.0
    %1164 = vmatpush1.msra.mxu0 0.0
    %1165 = vmatprep.subr.mxu0 0.0
    %1166 = vmatpush1.msra.mxu0 0.0
    %1167 = vmatprep.subr.mxu0 0.0
    %1168 = vmatpush1.msra.mxu0 0.0
    %1169 = vmatprep.subr.mxu0 0.0
    %1170 = vmatpush1.msra.mxu0 0.0
    %1171 = vmatprep.subr.mxu0 0.0
    %1172 = vmatpush1.msra.mxu0 0.0
    %1173 = vmatprep.subr.mxu0 0.0
    %1174 = vmatpush1.msra.mxu0 0.0
    %1175 = vmatprep.subr.mxu0 0.0
    %1176 = vmatpush1.msra.mxu0 0.0
    %1177 = vmatprep.subr.mxu0 0.0
    %1178 = vmatpush1.msra.mxu0 0.0
    %1179 = vmatprep.subr.mxu0 0.0
    %1180 = vmatpush1.msra.mxu0 0.0
    %1181 = vmatprep.subr.mxu0 0.0
    %1182 = vmatpush1.msra.mxu0 0.0
    %1183 = vmatprep.subr.mxu0 0.0
    %1184 = vmatpush1.msra.mxu0 0.0
    %1185 = vmatprep.subr.mxu0 0.0
    %1186 = vmatpush1.msra.mxu0 0.0
    %1187 = vmatprep.subr.mxu0 0.0
    %1188 = vmatpush1.msra.mxu0 0.0
    %1189 = vmatprep.subr.mxu0 0.0
    %1190 = vmatpush1.msra.mxu0 0.0
    %1191 = vmatprep.subr.mxu0 0.0
    %1192 = vmatpush1.msra.mxu0 0.0
    %1193 = vmatprep.subr.mxu0 0.0
    %1194 = vmatpush1.msra.mxu0 0.0
    %1195 = vmatprep.subr.mxu0 0.0
    %1196 = vmatpush1.msra.mxu0 0.0
    %1197 = vmatprep.subr.mxu0 0.0
    %1198 = vmatpush1.msra.mxu0 0.0
    %1199 = vmatprep.subr.mxu0 0.0
    %1200 = vmatpush1.msra.mxu0 0.0
    %1201 = vmatprep.subr.mxu0 0.0
    %1202 = vmatpush1.msra.mxu0 0.0
    %1203 = vmatprep.mubr.f32.mxu0 0.0
    %1204 = vmatmul.mubr.f32.gmra.mrb[0].mxu0 %v1134
    %v1205 = vpop.f32.mrb[0].mxu0
    %v1206 = vadd.f32 %v1132, %v1205
    %v1207 = vpop.f32.mrb[0].mxu0
    %1208 = vmatprep.mubr.f32.mxu0 0.0
    %1209 = vmatmul.mubr.f32.gmra.mrb[0].mxu0 %v1137
    %v1210 = vpop.f32.mrb[0].mxu0
    %v1211 = vadd.f32 %v1132, %v1210
    %v1212 = vpop.f32.mrb[0].mxu0
    %1213 = vdwg.mxu0
    %v1214 = vadd.f32 %v56, %v1206
    %v1215 = vadd.f32 %v57, %v1211
    %v1216 = vld [vmem:[#allocation7 + $0xe5] sm:$0x1]
    %v1217 = vld [vmem:[#allocation7 + $0xe6] sm:$0x1]
    %v1218 = vsel %vm95, %v1214, 0.0
    %1219 = vadd.xlane.f32.xlu0 %v1218
    %v1220 = vpop.xlane.xlu0 %1219
    %v1221 = vsel %vm95, %v1215, 0.0
    %1222 = vadd.xlane.f32.xlu0 %v1221
    %v1223 = vpop.xlane.xlu0 %1222
    %v1224 = vrcp.pop 32.0
    %v1225 = vmul.f32 %v1220, %v1224
    %v1226 = vmul.f32 %v1223, %v1224
    %v1227 = vsub.f32 %v1214, %v1225
    %v1228 = vsub.f32 %v1215, %v1226
    %v1229 = vmul.f32 %v1227, %v1227
    %v1230 = vmul.f32 %v1228, %v1228
    %v1231 = vsel %vm95, %v1229, 0.0
    %1232 = vadd.xlane.f32.xlu0 %v1231
    %v1233 = vpop.xlane.xlu0 %1232
    %v1234 = vsel %vm95, %v1230, 0.0
    %1235 = vadd.xlane.f32.xlu0 %v1234
    %v1236 = vpop.xlane.xlu0 %1235
    %v1237 = vmul.f32 %v1233, %v1224
    %v1238 = vmul.f32 %v1236, %v1224
    %v1239 = vadd.f32 %v1237, 1e-05
    %v1240 = vadd.f32 %v1238, 1e-05
    %v1241 = vrsqrt.pop %v1239
    %v1242 = vrsqrt.pop %v1240
    %v1243 = vmul.f32 %v1227, %v1241
    %v1244 = vmul.f32 %v1228, %v1242
    %v1245 = vlaneseq
    %v1246 = vshrl.u32 %v1245, 7
    %v1247 = vsub.s32 0, %v1246
    %v1248 = vrot.slane %v1216, %v1247
    %v1249 = vmul.f32 %v1243, %v1248
    %v1250 = vmul.f32 %v1244, %v1248
    %v1251 = vlaneseq
    %v1252 = vshrl.u32 %v1251, 7
    %v1253 = vsub.s32 0, %v1252
    %v1254 = vrot.slane %v1217, %v1253
    %v1255 = vadd.f32 %v1249, %v1254
    %v1256 = vadd.f32 %v1250, %v1254
    %v1257 = vld [vmem:[#allocation7 + $0xe9] sm:$0x1]
    %v1258 = vlaneseq
    %v1259 = vshrl.u32 %v1258, 7
    %v1260 = vsub.s32 0, %v1259
    %v1261 = vrot.slane %v1257, %v1260
    %v1263 = vsel %vm95, %v1255, 0
    %v1266 = vsel %vm95, %v1256, 0
    %1268 = vmatprep.subr.mxu0 0.0
    %1269 = vmatpush1.msra.mxu0 %v78
    %1270 = vmatprep.subr.mxu0 0.0
    %1271 = vmatpush1.msra.mxu0 %v79
    %1272 = vmatprep.subr.mxu0 0.0
    %1273 = vmatpush1.msra.mxu0 %v80
    %1274 = vmatprep.subr.mxu0 0.0
    %1275 = vmatpush1.msra.mxu0 %v81
    %1276 = vmatprep.subr.mxu0 0.0
    %1277 = vmatpush1.msra.mxu0 0.0
    %1278 = vmatprep.subr.mxu0 0.0
    %1279 = vmatpush1.msra.mxu0 0.0
    %1280 = vmatprep.subr.mxu0 0.0
    %1281 = vmatpush1.msra.mxu0 0.0
    %1282 = vmatprep.subr.mxu0 0.0
    %1283 = vmatpush1.msra.mxu0 0.0
    %1284 = vmatprep.subr.mxu0 0.0
    %1285 = vmatpush1.msra.mxu0 0.0
    %1286 = vmatprep.subr.mxu0 0.0
    %1287 = vmatpush1.msra.mxu0 0.0
    %1288 = vmatprep.subr.mxu0 0.0
    %1289 = vmatpush1.msra.mxu0 0.0
    %1290 = vmatprep.subr.mxu0 0.0
    %1291 = vmatpush1.msra.mxu0 0.0
    %1292 = vmatprep.subr.mxu0 0.0
    %1293 = vmatpush1.msra.mxu0 0.0
    %1294 = vmatprep.subr.mxu0 0.0
    %1295 = vmatpush1.msra.mxu0 0.0
    %1296 = vmatprep.subr.mxu0 0.0
    %1297 = vmatpush1.msra.mxu0 0.0
    %1298 = vmatprep.subr.mxu0 0.0
    %1299 = vmatpush1.msra.mxu0 0.0
    %1300 = vmatprep.subr.mxu0 0.0
    %1301 = vmatpush1.msra.mxu0 0.0
    %1302 = vmatprep.subr.mxu0 0.0
    %1303 = vmatpush1.msra.mxu0 0.0
    %1304 = vmatprep.subr.mxu0 0.0
    %1305 = vmatpush1.msra.mxu0 0.0
    %1306 = vmatprep.subr.mxu0 0.0
    %1307 = vmatpush1.msra.mxu0 0.0
    %1308 = vmatprep.subr.mxu0 0.0
    %1309 = vmatpush1.msra.mxu0 0.0
    %1310 = vmatprep.subr.mxu0 0.0
    %1311 = vmatpush1.msra.mxu0 0.0
    %1312 = vmatprep.subr.mxu0 0.0
    %1313 = vmatpush1.msra.mxu0 0.0
    %1314 = vmatprep.subr.mxu0 0.0
    %1315 = vmatpush1.msra.mxu0 0.0
    %1316 = vmatprep.subr.mxu0 0.0
    %1317 = vmatpush1.msra.mxu0 0.0
    %1318 = vmatprep.subr.mxu0 0.0
    %1319 = vmatpush1.msra.mxu0 0.0
    %1320 = vmatprep.subr.mxu0 0.0
    %1321 = vmatpush1.msra.mxu0 0.0
    %1322 = vmatprep.subr.mxu0 0.0
    %1323 = vmatpush1.msra.mxu0 0.0
    %1324 = vmatprep.subr.mxu0 0.0
    %1325 = vmatpush1.msra.mxu0 0.0
    %1326 = vmatprep.subr.mxu0 0.0
    %1327 = vmatpush1.msra.mxu0 0.0
    %1328 = vmatprep.subr.mxu0 0.0
    %1329 = vmatpush1.msra.mxu0 0.0
    %1330 = vmatprep.subr.mxu0 0.0
    %1331 = vmatpush1.msra.mxu0 0.0
    %1332 = vmatprep.mubr.f32.mxu0 0.0
    %1333 = vmatmul.mubr.f32.gmra.mrb[0].mxu0 %v1263
    %v1334 = vpop.f32.mrb[0].mxu0
    %v1335 = vadd.f32 %v1261, %v1334
    %v1336 = vpop.f32.mrb[0].mxu0
    %1337 = vmatprep.mubr.f32.mxu0 0.0
    %1338 = vmatmul.mubr.f32.gmra.mrb[0].mxu0 %v1266
    %v1339 = vpop.f32.mrb[0].mxu0
    %v1340 = vadd.f32 %v1261, %v1339
    %v1341 = vpop.f32.mrb[0].mxu0
    %1342 = vdwg.mxu0
    %v1343 = vmax.f32 %v1335, 0.0
    %v1344 = vmax.f32 %v1340, 0.0
    %v1345 = vld [vmem:[#allocation7 + $0xe4] sm:$0x1]
    %v1346 = vlaneseq
    %v1347 = vshrl.u32 %v1346, 7
    %v1348 = vsub.s32 0, %v1347
    %v1349 = vrot.slane %v1345, %v1348
    %vm1350 = vcmask 523264
    %v1352 = vsel %vm1350, %v1343, 0
    %v1355 = vsel %vm1350, %v1344, 0
    %1357 = vmatprep.subr.mxu0 0.0
    %1358 = vmatpush1.msra.mxu0 %v82
    %1359 = vmatprep.subr.mxu0 0.0
    %1360 = vmatpush1.msra.mxu0 %v83
    %1361 = vmatprep.subr.mxu0 0.0
    %1362 = vmatpush1.msra.mxu0 %v84
    %1363 = vmatprep.subr.mxu0 0.0
    %1364 = vmatpush1.msra.mxu0 %v85
    %1365 = vmatprep.subr.mxu0 0.0
    %1366 = vmatpush1.msra.mxu0 %v86
    %1367 = vmatprep.subr.mxu0 0.0
    %1368 = vmatpush1.msra.mxu0 %v87
    %1369 = vmatprep.subr.mxu0 0.0
    %1370 = vmatpush1.msra.mxu0 %v88
    %1371 = vmatprep.subr.mxu0 0.0
    %1372 = vmatpush1.msra.mxu0 %v89
    %1373 = vmatprep.subr.mxu0 0.0
    %1374 = vmatpush1.msra.mxu0 0.0
    %1375 = vmatprep.subr.mxu0 0.0
    %1376 = vmatpush1.msra.mxu0 0.0
    %1377 = vmatprep.subr.mxu0 0.0
    %1378 = vmatpush1.msra.mxu0 0.0
    %1379 = vmatprep.subr.mxu0 0.0
    %1380 = vmatpush1.msra.mxu0 0.0
    %1381 = vmatprep.subr.mxu0 0.0
    %1382 = vmatpush1.msra.mxu0 0.0
    %1383 = vmatprep.subr.mxu0 0.0
    %1384 = vmatpush1.msra.mxu0 0.0
    %1385 = vmatprep.subr.mxu0 0.0
    %1386 = vmatpush1.msra.mxu0 0.0
    %1387 = vmatprep.subr.mxu0 0.0
    %1388 = vmatpush1.msra.mxu0 0.0
    %1389 = vmatprep.subr.mxu0 0.0
    %1390 = vmatpush1.msra.mxu0 0.0
    %1391 = vmatprep.subr.mxu0 0.0
    %1392 = vmatpush1.msra.mxu0 0.0
    %1393 = vmatprep.subr.mxu0 0.0
    %1394 = vmatpush1.msra.mxu0 0.0
    %1395 = vmatprep.subr.mxu0 0.0
    %1396 = vmatpush1.msra.mxu0 0.0
    %1397 = vmatprep.subr.mxu0 0.0
    %1398 = vmatpush1.msra.mxu0 0.0
    %1399 = vmatprep.subr.mxu0 0.0
    %1400 = vmatpush1.msra.mxu0 0.0
    %1401 = vmatprep.subr.mxu0 0.0
    %1402 = vmatpush1.msra.mxu0 0.0
    %1403 = vmatprep.subr.mxu0 0.0
    %1404 = vmatpush1.msra.mxu0 0.0
    %1405 = vmatprep.subr.mxu0 0.0
    %1406 = vmatpush1.msra.mxu0 0.0
    %1407 = vmatprep.subr.mxu0 0.0
    %1408 = vmatpush1.msra.mxu0 0.0
    %1409 = vmatprep.subr.mxu0 0.0
    %1410 = vmatpush1.msra.mxu0 0.0
    %1411 = vmatprep.subr.mxu0 0.0
    %1412 = vmatpush1.msra.mxu0 0.0
    %1413 = vmatprep.subr.mxu0 0.0
    %1414 = vmatpush1.msra.mxu0 0.0
    %1415 = vmatprep.subr.mxu0 0.0
    %1416 = vmatpush1.msra.mxu0 0.0
    %1417 = vmatprep.subr.mxu0 0.0
    %1418 = vmatpush1.msra.mxu0 0.0
    %1419 = vmatprep.subr.mxu0 0.0
    %1420 = vmatpush1.msra.mxu0 0.0
    %1421 = vmatprep.mubr.f32.mxu0 0.0
    %1422 = vmatmul.mubr.f32.gmra.mrb[0].mxu0 %v1352
    %v1423 = vpop.f32.mrb[0].mxu0
    %v1424 = vadd.f32 %v1349, %v1423
    %v1425 = vpop.f32.mrb[0].mxu0
    %1426 = vmatprep.mubr.f32.mxu0 0.0
    %1427 = vmatmul.mubr.f32.gmra.mrb[0].mxu0 %v1355
    %v1428 = vpop.f32.mrb[0].mxu0
    %v1429 = vadd.f32 %v1349, %v1428
    %v1430 = vpop.f32.mrb[0].mxu0
    %1431 = vdwg.mxu0
    %v1432 = vadd.f32 %v1255, %v1424
    %v1433 = vadd.f32 %v1256, %v1429
    %v1434 = vld [vmem:[#allocation7 + $0xe7] sm:$0x1]
    %v1435 = vld [vmem:[#allocation7 + $0xe8] sm:$0x1]
    %v1436 = vsel %vm95, %v1432, 0.0
    %1437 = vadd.xlane.f32.xlu0 %v1436
    %v1438 = vpop.xlane.xlu0 %1437
    %v1439 = vsel %vm95, %v1433, 0.0
    %1440 = vadd.xlane.f32.xlu0 %v1439
    %v1441 = vpop.xlane.xlu0 %1440
    %v1442 = vmul.f32 %v1438, %v1224
    %v1443 = vmul.f32 %v1441, %v1224
    %v1444 = vsub.f32 %v1432, %v1442
    %v1445 = vsub.f32 %v1433, %v1443
    %v1446 = vmul.f32 %v1444, %v1444
    %v1447 = vmul.f32 %v1445, %v1445
    %v1448 = vsel %vm95, %v1446, 0.0
    %1449 = vadd.xlane.f32.xlu0 %v1448
    %v1450 = vpop.xlane.xlu0 %1449
    %v1451 = vsel %vm95, %v1447, 0.0
    %1452 = vadd.xlane.f32.xlu0 %v1451
    %v1453 = vpop.xlane.xlu0 %1452
    %v1454 = vmul.f32 %v1450, %v1224
    %v1455 = vmul.f32 %v1453, %v1224
    %v1456 = vadd.f32 %v1454, 1e-05
    %v1457 = vadd.f32 %v1455, 1e-05
    %v1458 = vrsqrt.pop %v1456
    %v1459 = vrsqrt.pop %v1457
    %v1460 = vmul.f32 %v1444, %v1458
    %v1461 = vmul.f32 %v1445, %v1459
    %v1462 = vlaneseq
    %v1463 = vshrl.u32 %v1462, 7
    %v1464 = vsub.s32 0, %v1463
    %v1465 = vrot.slane %v1434, %v1464
    %v1466 = vmul.f32 %v1460, %v1465
    %v1467 = vmul.f32 %v1461, %v1465
    %v1468 = vlaneseq
    %v1469 = vshrl.u32 %v1468, 7
    %v1470 = vsub.s32 0, %v1469
    %v1471 = vrot.slane %v1435, %v1470
    %v1472 = vadd.f32 %v1466, %v1471
    %v1473 = vadd.f32 %v1467, %v1471
    %1474 = vst.msk [vmem:[#allocation8] sm:$0xff] %vm95, %v1472
    %1475 = vst.msk [vmem:[#allocation8 + $0x8] sm:$0xff] %vm95, %v1473
    // Predicated region
    $region26: #{transformer_encoder_layer.1} parent=1 // pred_check
      _
    $region27: #{transformer_encoder_layer.1} parent=1 // pred_check_branch
      %1477 = sbr.rel (0) target = $region29
    $region28: #{transformer_encoder_layer.1} parent=1 // pred_region
      %s1479 = ssub.s32 256, 256
      %1480 = vsyncadd [#allocation4], %s1479
      %s1481 = sshll.u32 [#allocation8], 4
      %s1482 = int_to_ptr.vmem [resolvable:$true] %s1481
      %1487 = dma.vmem_to_hbm [thread:$0]  %s1482, 256, %s3, [#allocation4], 128, 128, 8
    $region29: #{transformer_encoder_layer.1} parent=1 // pred_fallthru
      _
    // Predicated region
    $region30: #{transformer_encoder_layer.1} parent=1 // pred_check
      _
    $region31: #{transformer_encoder_layer.1} parent=1 // pred_check_branch
      %1489 = sbr.rel (0) target = $region33
    $region32: #{transformer_encoder_layer.1} parent=1 // pred_region
      %1490 = dma.done [#allocation4], 256
    $region33: #{transformer_encoder_layer.1} parent=1 // pred_fallthru
      _
    %1491 = vsyncpa [#allocation3], 1
    %1492 = vsyncpa [#allocation6], 1
    %1493 = vsyncpa [#allocation4], 1

</llo_original>
